<compile_context>
chip_gen: v7x
topology: tpu7x:2x2x1
jax: 0.10.0
libtpu: 0.0.40
codegen_flags: <defaults>
</compile_context>

<pallas_src>
import math

import jax
import jax.numpy as jnp
from jax import lax
from jax.experimental import pallas as pl
from jax.experimental.pallas import tpu as pltpu


# ---------------------------------------------------------------------------
# In-kernel elementwise helpers (float32)
# ---------------------------------------------------------------------------
_LOG2 = math.log(2.0)


def _shifted_softplus(x):
    # softplus(x) - log(2), numerically stable
    return jnp.maximum(x, 0.0) + jnp.log1p(jnp.exp(-jnp.abs(x))) - _LOG2


def _gelu_exact(x):
    # torch.nn.functional.gelu default = exact (erf) gelu
    return 0.5 * x * (1.0 + lax.erf(x * (1.0 / math.sqrt(2.0))))


# ---------------------------------------------------------------------------
# Pallas kernel
# ---------------------------------------------------------------------------
def _schnet_kernel(
    x_ref, ea_ref, g_ref, s_ref, p_ref,
    emb_w, emb_b,
    mlp0_w, mlp0_b, mlp2_w, mlp2_b,
    lin1_w, lin2_w, lin2_b, lin_w, lin_b,
    bn_scale, bn_shift,
    fin_w, fin_b,
    out_ref,
    h_s, agg_s, x1_s,
):
    f32 = jnp.float32
    bf16 = jnp.bfloat16

    l = pl.program_id(0)          # conv layer
    e = pl.program_id(1)          # edge tile
    n_l = pl.num_programs(0)
    n_e = pl.num_programs(1)

    # ---- very first step: node embedding  h = x @ We + be ------------------
    @pl.when((l == 0) & (e == 0))
    def _():
        h_s[...] = (
            jnp.dot(x_ref[...], emb_w[...], preferred_element_type=f32)
            + emb_b[...]
        )

    # ---- layer start (first edge tile): reset accumulator, x1 = lin1(h) ----
    @pl.when(e == 0)
    def _():
        agg_s[...] = jnp.zeros_like(agg_s)
        x1_s[...] = jnp.dot(
            h_s[...].astype(bf16), lin1_w[0], preferred_element_type=f32
        ).astype(bf16)

    # ---- per edge tile: edge-filter MLP, gather, message, scatter-add ------
    ea = ea_ref[...]                                                   # [TE, F] bf16
    w_hid = jnp.dot(ea, mlp0_w[0], preferred_element_type=f32) + mlp0_b[0]
    w_hid = _shifted_softplus(w_hid)                                   # f32
    W = (
        jnp.dot(w_hid.astype(bf16), mlp2_w[0], preferred_element_type=f32)
        + mlp2_b[0]
    )                                                                  # [TE, H]

    # gather x1[src] for this edge tile (one-hot slab @ VMEM-resident x1)
    xj = jnp.dot(g_ref[...], x1_s[...], preferred_element_type=f32)    # [TE, H]
    msg = (xj * W).astype(bf16)                                        # [TE, H]
    # scatter-add over dst for this edge tile
    agg_s[...] += jnp.dot(s_ref[...], msg, preferred_element_type=f32)  # [N, H]

    # ---- layer end: lin2 -> act -> lin -> batchnorm -> gelu -> residual ----
    @pl.when(e == n_e - 1)
    def _():
        y = (
            jnp.dot(agg_s[...].astype(bf16), lin2_w[0], preferred_element_type=f32)
            + lin2_b[0]
        )
        y = _shifted_softplus(y)
        y = (
            jnp.dot(y.astype(bf16), lin_w[0], preferred_element_type=f32)
            + lin_b[0]
        )
        y = y * bn_scale[0] + bn_shift[0]          # BatchNorm (eval), folded
        y = _gelu_exact(y)
        h_s[...] = h_s[...] + y                    # residual_connection == "res"

    # ---- very last step: final projection + global_add_pool ----------------
    @pl.when((l == n_l - 1) & (e == n_e - 1))
    def _():
        node_out = (
            jnp.dot(h_s[...].astype(bf16), fin_w[...], preferred_element_type=f32)
            + fin_b[...]
        )                                                              # [N, OUT]
        out_ref[...] = jnp.dot(
            p_ref[...], node_out.astype(bf16), preferred_element_type=f32
        )                                                              # [G, OUT]


# ---------------------------------------------------------------------------
# Wrapper: padding, one-hot slabs, stacked layer weights, pallas_call
# ---------------------------------------------------------------------------
def _round_up(v, m):
    return ((v + m - 1) // m) * m


def _pad2(a, rows, cols, dtype):
    out = jnp.zeros((rows, cols), dtype)
    return out.at[: a.shape[0], : a.shape[1]].set(a.astype(dtype))


def schnet_encoder_forward(x, edge_index, edge_attr, batch, params, *,
                           num_graphs, edge_tile=128):
    f32, bf16 = jnp.float32, jnp.bfloat16

    n_nodes, in_dim = x.shape
    n_edges, n_ef = edge_attr.shape
    hidden = params["emb_w"].shape[1]
    out_dim = params["final_w"].shape[1]
    n_layers = len(params["layers"])

    # lane/sublane-friendly padded sizes
    H = _round_up(max(hidden, 128), 128)       # hidden lane-dense
    OUT = _round_up(max(out_dim, 128), 128)    # output lane-dense
    Np = _round_up(n_nodes, 8)
    TE = edge_tile
    Ep = _round_up(max(n_edges, TE), TE)
    Gp = _round_up(max(num_graphs, 8), 8)
    n_etiles = Ep // TE

    # ---- padded inputs ------------------------------------------------------
    x_p = _pad2(x, Np, in_dim, bf16)
    ea_p = _pad2(edge_attr, Ep, n_ef, bf16)

    src = edge_index[0].astype(jnp.int32)
    dst = edge_index[1].astype(jnp.int32)
    pad_e = -jnp.ones((Ep - n_edges,), jnp.int32)          # sentinel: matches nothing
    pad_n = -jnp.ones((Np - n_nodes,), jnp.int32)
    src_p = jnp.concatenate([src, pad_e])
    dst_p = jnp.concatenate([dst, pad_e])
    batch_p = jnp.concatenate([batch.astype(jnp.int32), pad_n])

    node_ids = jnp.arange(Np, dtype=jnp.int32)
    graph_ids = jnp.arange(Gp, dtype=jnp.int32)
    # built directly in final orientation (no HBM transpose pass)
    G_mat = (src_p[:, None] == node_ids[None, :]).astype(bf16)     # [Ep, Np]
    S_mat = (node_ids[:, None] == dst_p[None, :]).astype(bf16)     # [Np, Ep]
    P_mat = (graph_ids[:, None] == batch_p[None, :]).astype(bf16)  # [Gp, Np]

    # ---- padded / stacked weights (weights bf16, biases & bn affine f32) ---
    emb_w = _pad2(params["emb_w"], in_dim, H, bf16)
    emb_b = _pad2(params["emb_b"], 1, H, f32)
    fin_w = _pad2(params["final_w"], H, OUT, bf16)
    fin_b = _pad2(params["final_b"], 1, OUT, f32)

    def stack(key, rows, cols, dtype):
        return jnp.stack([_pad2(lp[key], rows, cols, dtype)
                          for lp in params["layers"]])

    mlp0_w = stack("mlp0_w", n_ef, H, bf16)
    mlp0_b = stack("mlp0_b", 1, H, f32)
    mlp2_w = stack("mlp2_w", H, H, bf16)
    mlp2_b = stack("mlp2_b", 1, H, f32)
    lin1_w = stack("lin1_w", H, H, bf16)
    lin2_w = stack("lin2_w", H, H, bf16)
    lin2_b = stack("lin2_b", 1, H, f32)
    lin_w = stack("lin_w", H, H, bf16)
    lin_b = stack("lin_b", 1, H, f32)
    bn_s = stack("bn_scale", 1, H, f32)
    bn_t = stack("bn_shift", 1, H, f32)

    # ---- BlockSpecs ---------------------------------------------------------
    def const_spec(shape):
        return pl.BlockSpec(shape, lambda l, e: (0,) * len(shape))

    def per_layer(shape):          # leading axis = layer index
        return pl.BlockSpec(shape, lambda l, e: (l,) + (0,) * (len(shape) - 1))

    in_specs = [
        const_spec((Np, in_dim)),                          # x
        pl.BlockSpec((TE, n_ef), lambda l, e: (e, 0)),     # edge_attr tile
        pl.BlockSpec((TE, Np), lambda l, e: (e, 0)),       # G tile  [TE, N]
        pl.BlockSpec((Np, TE), lambda l, e: (0, e)),       # S tile  [N, TE]
        const_spec((Gp, Np)),                              # P (pool)
        const_spec((in_dim, H)), const_spec((1, H)),       # emb_w, emb_b
        per_layer((1, n_ef, H)), per_layer((1, 1, H)),     # mlp0_w, mlp0_b
        per_layer((1, H, H)), per_layer((1, 1, H)),        # mlp2_w, mlp2_b
        per_layer((1, H, H)),                              # lin1_w
        per_layer((1, H, H)), per_layer((1, 1, H)),        # lin2_w, lin2_b
        per_layer((1, H, H)), per_layer((1, 1, H)),        # lin_w, lin_b
        per_layer((1, 1, H)), per_layer((1, 1, H)),        # bn_scale, bn_shift
        const_spec((H, OUT)), const_spec((1, OUT)),        # fin_w, fin_b
    ]

    grid_spec = pltpu.PrefetchScalarGridSpec(
        num_scalar_prefetch=0,
        grid=(n_layers, n_etiles),
        in_specs=in_specs,
        out_specs=pl.BlockSpec((Gp, OUT), lambda l, e: (0, 0)),
        scratch_shapes=[
            pltpu.VMEM((Np, H), f32),    # h  (node state, carried across layers)
            pltpu.VMEM((Np, H), f32),    # agg (scatter-add accumulator)
            pltpu.VMEM((Np, H), bf16),   # x1 = lin1(h), reused across edge tiles
        ],
    )

    out_padded = pl.pallas_call(
        _schnet_kernel,
        out_shape=jax.ShapeDtypeStruct((Gp, OUT), jnp.float32),
        grid_spec=grid_spec,
        compiler_params=pltpu.CompilerParams(
            # both axes carry state through VMEM scratch -> sequential
            dimension_semantics=("arbitrary", "arbitrary"),
            vmem_limit_bytes=32 * 1024 * 1024,   # safe on v7x (64 MiB physical)
        ),
    )(
        x_p, ea_p, G_mat, S_mat, P_mat,
        emb_w, emb_b,
        mlp0_w, mlp0_b, mlp2_w, mlp2_b,
        lin1_w, lin2_w, lin2_b, lin_w, lin_b,
        bn_s, bn_t,
        fin_w, fin_b,
    )
    return out_padded[:num_graphs, :out_dim]


# ---------------------------------------------------------------------------
# Deterministic parameter init (xavier uniform weights, zero biases).
# BatchNorm (eval) is pre-folded: scale = gamma/sqrt(var+eps),
# shift = beta - mean*scale (here mean=0, var=1, gamma=1, beta=0).
# Real checkpoints must be folded the same way before calling the kernel.
# ---------------------------------------------------------------------------
def _xavier(key, fan_in, fan_out):
    limit = math.sqrt(6.0 / (fan_in + fan_out))
    return jax.random.uniform(
        key, (fan_in, fan_out), jnp.float32, minval=-limit, maxval=limit
    )


def init_params(key, input_dim, hidden_dim, output_dim, n_conv_layers,
                num_edge_features, bn_eps=1e-5):
    keys = jax.random.split(key, 2 + 6 * n_conv_layers)
    ki = iter(keys)

    params = {
        "emb_w": _xavier(next(ki), input_dim, hidden_dim),
        "emb_b": jnp.zeros((1, hidden_dim), jnp.float32),
        "layers": [],
        "final_w": _xavier(next(ki), hidden_dim, output_dim),
        "final_b": jnp.zeros((1, output_dim), jnp.float32),
    }
    for _ in range(n_conv_layers):
        bn_scale = jnp.full((1, hidden_dim), 1.0 / math.sqrt(1.0 + bn_eps), jnp.float32)
        bn_shift = jnp.zeros((1, hidden_dim), jnp.float32)
        params["layers"].append({
            "mlp0_w": _xavier(next(ki), num_edge_features, hidden_dim),
            "mlp0_b": jnp.zeros((1, hidden_dim), jnp.float32),
            "mlp2_w": _xavier(next(ki), hidden_dim, hidden_dim),
            "mlp2_b": jnp.zeros((1, hidden_dim), jnp.float32),
            "lin1_w": _xavier(next(ki), hidden_dim, hidden_dim),
            "lin2_w": _xavier(next(ki), hidden_dim, hidden_dim),
            "lin2_b": jnp.zeros((1, hidden_dim), jnp.float32),
            "lin_w": _xavier(next(ki), hidden_dim, hidden_dim),
            "lin_b": jnp.zeros((1, hidden_dim), jnp.float32),
            "bn_scale": bn_scale,
            "bn_shift": bn_shift,
        })
    return params


# ---------------------------------------------------------------------------
if __name__ == "__main__":
    INPUT_DIM = 8          # number of pharmacophore feature types
    HIDDEN_DIM = 32
    OUTPUT_DIM = 16
    N_CONV_LAYERS = 2
    NUM_EDGE_FEATURES = 8  # distance-encoding bins
    N_NODES = 16
    N_EDGES = 32
    NUM_GRAPHS = 2

    key = jax.random.PRNGKey(0)
    k_x, k_ea, k_src, k_dst, k_params = jax.random.split(key, 5)

    x = jax.random.normal(k_x, (N_NODES, INPUT_DIM), jnp.float32)
    edge_attr = jax.random.uniform(k_ea, (N_EDGES, NUM_EDGE_FEATURES), jnp.float32)
    src = jax.random.randint(k_src, (N_EDGES,), 0, N_NODES)
    dst = jax.random.randint(k_dst, (N_EDGES,), 0, N_NODES)
    edge_index = jnp.stack([src, dst], axis=0)                          # [2, E]
    batch = jnp.repeat(jnp.arange(NUM_GRAPHS), N_NODES // NUM_GRAPHS)   # [N]

    params = init_params(
        k_params, INPUT_DIM, HIDDEN_DIM, OUTPUT_DIM, N_CONV_LAYERS, NUM_EDGE_FEATURES
    )

    rep = schnet_encoder_forward(
        x, edge_index, edge_attr, batch, params, num_graphs=NUM_GRAPHS
    )
    rep = jax.block_until_ready(rep)
    assert rep.shape == (NUM_GRAPHS, OUTPUT_DIM)
    assert bool(jnp.all(jnp.isfinite(rep)))
    print("KERNEL_OK")
</pallas_src>

<mosaic_0001>
module attributes {stable_mosaic.version = 11 : i64} {
  func.func @_schnet_kernel(%arg0: i32, %arg1: i32, %arg2: memref<16x8xbf16, #tpu.memory_space<vmem>>, %arg3: memref<128x8xbf16, #tpu.memory_space<vmem>>, %arg4: memref<128x16xbf16, #tpu.memory_space<vmem>>, %arg5: memref<16x128xbf16, #tpu.memory_space<vmem>>, %arg6: memref<8x16xbf16, #tpu.memory_space<vmem>>, %arg7: memref<8x128xbf16, #tpu.memory_space<vmem>>, %arg8: memref<1x128xf32, #tpu.memory_space<vmem>>, %arg9: memref<1x8x128xbf16, #tpu.memory_space<vmem>>, %arg10: memref<1x1x128xf32, #tpu.memory_space<vmem>>, %arg11: memref<1x128x128xbf16, #tpu.memory_space<vmem>>, %arg12: memref<1x1x128xf32, #tpu.memory_space<vmem>>, %arg13: memref<1x128x128xbf16, #tpu.memory_space<vmem>>, %arg14: memref<1x128x128xbf16, #tpu.memory_space<vmem>>, %arg15: memref<1x1x128xf32, #tpu.memory_space<vmem>>, %arg16: memref<1x128x128xbf16, #tpu.memory_space<vmem>>, %arg17: memref<1x1x128xf32, #tpu.memory_space<vmem>>, %arg18: memref<1x1x128xf32, #tpu.memory_space<vmem>>, %arg19: memref<1x1x128xf32, #tpu.memory_space<vmem>>, %arg20: memref<128x128xbf16, #tpu.memory_space<vmem>>, %arg21: memref<1x128xf32, #tpu.memory_space<vmem>>, %arg22: memref<8x128xf32, #tpu.memory_space<vmem>>, %arg23: memref<16x128xf32, #tpu.memory_space<vmem>>, %arg24: memref<16x128xf32, #tpu.memory_space<vmem>>, %arg25: memref<16x128xbf16, #tpu.memory_space<vmem>>) attributes {dimension_semantics = [#tpu.dimension_semantics<arbitrary>, #tpu.dimension_semantics<arbitrary>], iteration_bounds = array<i64: 2, 1>, scalar_prefetch = 0 : i64, scratch_operands = 3 : i64, tpu.core_type = #tpu.core_type<tc>, window_params = [{pipeline_mode = #tpu.pipeline_mode<synchronous>, transform_indices = @transform_0, window_bounds = array<i64: 16, 8>}, {transform_indices = @transform_1, window_bounds = array<i64: 128, 8>}, {transform_indices = @transform_2, window_bounds = array<i64: 128, 16>}, {transform_indices = @transform_3, window_bounds = array<i64: 16, 128>}, {pipeline_mode = #tpu.pipeline_mode<synchronous>, transform_indices = @transform_4, window_bounds = array<i64: 8, 16>}, {pipeline_mode = #tpu.pipeline_mode<synchronous>, transform_indices = @transform_5, window_bounds = array<i64: 8, 128>}, {pipeline_mode = #tpu.pipeline_mode<synchronous>, transform_indices = @transform_6, window_bounds = array<i64: 1, 128>}, {transform_indices = @transform_7, window_bounds = array<i64: 1, 8, 128>}, {transform_indices = @transform_8, window_bounds = array<i64: 1, 1, 128>}, {transform_indices = @transform_9, window_bounds = array<i64: 1, 128, 128>}, {transform_indices = @transform_10, window_bounds = array<i64: 1, 1, 128>}, {transform_indices = @transform_11, window_bounds = array<i64: 1, 128, 128>}, {transform_indices = @transform_12, window_bounds = array<i64: 1, 128, 128>}, {transform_indices = @transform_13, window_bounds = array<i64: 1, 1, 128>}, {transform_indices = @transform_14, window_bounds = array<i64: 1, 128, 128>}, {transform_indices = @transform_15, window_bounds = array<i64: 1, 1, 128>}, {transform_indices = @transform_16, window_bounds = array<i64: 1, 1, 128>}, {transform_indices = @transform_17, window_bounds = array<i64: 1, 1, 128>}, {pipeline_mode = #tpu.pipeline_mode<synchronous>, transform_indices = @transform_18, window_bounds = array<i64: 128, 128>}, {pipeline_mode = #tpu.pipeline_mode<synchronous>, transform_indices = @transform_19, window_bounds = array<i64: 1, 128>}, {pipeline_mode = #tpu.pipeline_mode<synchronous>, transform_indices = @transform_20, window_bounds = array<i64: 8, 128>}]} {
    %c0_i32 = arith.constant 0 : i32
    %0 = arith.cmpi eq, %arg0, %c0_i32 : i32
    %c0_i32_0 = arith.constant 0 : i32
    %1 = arith.cmpi eq, %arg1, %c0_i32_0 : i32
    %2 = arith.andi %0, %1 : i1
    %3 = arith.extui %2 : i1 to i32
    %c0_i32_1 = arith.constant 0 : i32
    %4 = arith.cmpi ne, %3, %c0_i32_1 : i32
    scf.if %4 {
      %c0_37 = arith.constant 0 : index
      %c0_38 = arith.constant 0 : index
      %52 = vector.load %arg2[%c0_37, %c0_38] : memref<16x8xbf16, #tpu.memory_space<vmem>>, vector<16x8xbf16>
      %c0_39 = arith.constant 0 : index
      %c0_40 = arith.constant 0 : index
      %53 = vector.load %arg7[%c0_39, %c0_40] : memref<8x128xbf16, #tpu.memory_space<vmem>>, vector<8x128xbf16>
      %cst_41 = arith.constant dense<0.000000e+00> : vector<16x128xf32>
      %54 = tpu.matmul %52, %53, %cst_41 {dimension_numbers = #tpu.dot_dimension_numbers<[1], [0], [0], [1], [0, 0, 1, 1], [], []>} : vector<16x8xbf16>, vector<8x128xbf16>, vector<16x128xf32> -> vector<16x128xf32>
      %c0_42 = arith.constant 0 : index
      %c0_43 = arith.constant 0 : index
      %55 = vector.load %arg8[%c0_42, %c0_43] : memref<1x128xf32, #tpu.memory_space<vmem>>, vector<1x128xf32>
      %56 = vector.broadcast %55 : vector<1x128xf32> to vector<16x128xf32>
      %57 = arith.addf %54, %56 : vector<16x128xf32>
      %c0_44 = arith.constant 0 : index
      %c0_45 = arith.constant 0 : index
      %58 = vector.load %arg23[%c0_44, %c0_45] : memref<16x128xf32, #tpu.memory_space<vmem>>, vector<16x128xf32>
      tpu.vector_store %arg23[%c0_44, %c0_45], %57 {strides = array<i32>} : memref<16x128xf32, #tpu.memory_space<vmem>>, vector<16x128xf32>,
    } else {
    }
    %c0_i32_2 = arith.constant 0 : i32
    %5 = arith.cmpi eq, %arg1, %c0_i32_2 : i32
    %6 = arith.extui %5 : i1 to i32
    %c0_i32_3 = arith.constant 0 : i32
    %7 = arith.cmpi ne, %6, %c0_i32_3 : i32
    scf.if %7 {
      %cst_37 = arith.constant 0.000000e+00 : f32
      %52 = vector.broadcast %cst_37 : f32 to vector<16x128xf32>
      %c0_38 = arith.constant 0 : index
      %c0_39 = arith.constant 0 : index
      %53 = vector.load %arg24[%c0_38, %c0_39] : memref<16x128xf32, #tpu.memory_space<vmem>>, vector<16x128xf32>
      tpu.vector_store %arg24[%c0_38, %c0_39], %52 {strides = array<i32>} : memref<16x128xf32, #tpu.memory_space<vmem>>, vector<16x128xf32>,
      %c0_40 = arith.constant 0 : index
      %c0_41 = arith.constant 0 : index
      %54 = vector.load %arg23[%c0_40, %c0_41] : memref<16x128xf32, #tpu.memory_space<vmem>>, vector<16x128xf32>
      %55 = arith.truncf %54 : vector<16x128xf32> to vector<16x128xbf16>
      %c0_42 = arith.constant 0 : index
      %c0_43 = arith.constant 0 : index
      %c0_44 = arith.constant 0 : index
      %56 = vector.load %arg13[%c0_42, %c0_43, %c0_44] : memref<1x128x128xbf16, #tpu.memory_space<vmem>>, vector<1x128x128xbf16>
      %57 = vector.shape_cast %56 : vector<1x128x128xbf16> to vector<128x128xbf16>
      %cst_45 = arith.constant dense<0.000000e+00> : vector<16x128xf32>
      %58 = tpu.matmul %55, %57, %cst_45 {dimension_numbers = #tpu.dot_dimension_numbers<[1], [0], [0], [1], [0, 0, 1, 1], [], []>} : vector<16x128xbf16>, vector<128x128xbf16>, vector<16x128xf32> -> vector<16x128xf32>
      %59 = arith.truncf %58 : vector<16x128xf32> to vector<16x128xbf16>
      %c0_46 = arith.constant 0 : index
      %c0_47 = arith.constant 0 : index
      %60 = vector.load %arg25[%c0_46, %c0_47] : memref<16x128xbf16, #tpu.memory_space<vmem>>, vector<16x128xbf16>
      tpu.vector_store %arg25[%c0_46, %c0_47], %59 {strides = array<i32>} : memref<16x128xbf16, #tpu.memory_space<vmem>>, vector<16x128xbf16>,
    } else {
    }
    %c0 = arith.constant 0 : index
    %c0_4 = arith.constant 0 : index
    %8 = vector.load %arg3[%c0, %c0_4] : memref<128x8xbf16, #tpu.memory_space<vmem>>, vector<128x8xbf16>
    %c0_5 = arith.constant 0 : index
    %c0_6 = arith.constant 0 : index
    %c0_7 = arith.constant 0 : index
    %9 = vector.load %arg9[%c0_5, %c0_6, %c0_7] : memref<1x8x128xbf16, #tpu.memory_space<vmem>>, vector<1x8x128xbf16>
    %10 = vector.shape_cast %9 : vector<1x8x128xbf16> to vector<8x128xbf16>
    %cst = arith.constant dense<0.000000e+00> : vector<128x128xf32>
    %11 = tpu.matmul %8, %10, %cst {dimension_numbers = #tpu.dot_dimension_numbers<[1], [0], [0], [1], [0, 0, 1, 1], [], []>} : vector<128x8xbf16>, vector<8x128xbf16>, vector<128x128xf32> -> vector<128x128xf32>
    %c0_8 = arith.constant 0 : index
    %c0_9 = arith.constant 0 : index
    %c0_10 = arith.constant 0 : index
    %12 = vector.load %arg10[%c0_8, %c0_9, %c0_10] : memref<1x1x128xf32, #tpu.memory_space<vmem>>, vector<1x1x128xf32>
    %13 = vector.shape_cast %12 : vector<1x1x128xf32> to vector<1x128xf32>
    %14 = vector.broadcast %13 : vector<1x128xf32> to vector<128x128xf32>
    %15 = arith.addf %11, %14 : vector<128x128xf32>
    %cst_11 = arith.constant 0.000000e+00 : f32
    %16 = vector.broadcast %cst_11 : f32 to vector<128x128xf32>
    %17 = arith.maximumf %15, %16 : vector<128x128xf32>
    %18 = math.absf %15 : vector<128x128xf32>
    %cst_12 = arith.constant 0.000000e+00 : f32
    %19 = vector.broadcast %cst_12 : f32 to vector<128x128xf32>
    %20 = arith.subf %19, %18 : vector<128x128xf32>
    %21 = math.exp %20 : vector<128x128xf32>
    %22 = math.log1p %21 : vector<128x128xf32>
    %23 = arith.addf %17, %22 : vector<128x128xf32>
    %cst_13 = arith.constant 0.693147182 : f32
    %24 = vector.broadcast %cst_13 : f32 to vector<128x128xf32>
    %25 = arith.subf %23, %24 : vector<128x128xf32>
    %26 = arith.truncf %25 : vector<128x128xf32> to vector<128x128xbf16>
    %c0_14 = arith.constant 0 : index
    %c0_15 = arith.constant 0 : index
    %c0_16 = arith.constant 0 : index
    %27 = vector.load %arg11[%c0_14, %c0_15, %c0_16] : memref<1x128x128xbf16, #tpu.memory_space<vmem>>, vector<1x128x128xbf16>
    %28 = vector.shape_cast %27 : vector<1x128x128xbf16> to vector<128x128xbf16>
    %cst_17 = arith.constant dense<0.000000e+00> : vector<128x128xf32>
    %29 = tpu.matmul %26, %28, %cst_17 {dimension_numbers = #tpu.dot_dimension_numbers<[1], [0], [0], [1], [0, 0, 1, 1], [], []>} : vector<128x128xbf16>, vector<128x128xbf16>, vector<128x128xf32> -> vector<128x128xf32>
    %c0_18 = arith.constant 0 : index
    %c0_19 = arith.constant 0 : index
    %c0_20 = arith.constant 0 : index
    %30 = vector.load %arg12[%c0_18, %c0_19, %c0_20] : memref<1x1x128xf32, #tpu.memory_space<vmem>>, vector<1x1x128xf32>
    %31 = vector.shape_cast %30 : vector<1x1x128xf32> to vector<1x128xf32>
    %32 = vector.broadcast %31 : vector<1x128xf32> to vector<128x128xf32>
    %33 = arith.addf %29, %32 : vector<128x128xf32>
    %c0_21 = arith.constant 0 : index
    %c0_22 = arith.constant 0 : index
    %34 = vector.load %arg4[%c0_21, %c0_22] : memref<128x16xbf16, #tpu.memory_space<vmem>>, vector<128x16xbf16>
    %c0_23 = arith.constant 0 : index
    %c0_24 = arith.constant 0 : index
    %35 = vector.load %arg25[%c0_23, %c0_24] : memref<16x128xbf16, #tpu.memory_space<vmem>>, vector<16x128xbf16>
    %cst_25 = arith.constant dense<0.000000e+00> : vector<128x128xf32>
    %36 = tpu.matmul %34, %35, %cst_25 {dimension_numbers = #tpu.dot_dimension_numbers<[1], [0], [0], [1], [0, 0, 1, 1], [], []>} : vector<128x16xbf16>, vector<16x128xbf16>, vector<128x128xf32> -> vector<128x128xf32>
    %37 = arith.mulf %36, %33 : vector<128x128xf32>
    %38 = arith.truncf %37 : vector<128x128xf32> to vector<128x128xbf16>
    %c0_26 = arith.constant 0 : index
    %c0_27 = arith.constant 0 : index
    %39 = vector.load %arg24[%c0_26, %c0_27] : memref<16x128xf32, #tpu.memory_space<vmem>>, vector<16x128xf32>
    %c0_28 = arith.constant 0 : index
    %c0_29 = arith.constant 0 : index
    %40 = vector.load %arg5[%c0_28, %c0_29] : memref<16x128xbf16, #tpu.memory_space<vmem>>, vector<16x128xbf16>
    %cst_30 = arith.constant dense<0.000000e+00> : vector<16x128xf32>
    %41 = tpu.matmul %40, %38, %cst_30 {dimension_numbers = #tpu.dot_dimension_numbers<[1], [0], [0], [1], [0, 0, 1, 1], [], []>} : vector<16x128xbf16>, vector<128x128xbf16>, vector<16x128xf32> -> vector<16x128xf32>
    %42 = arith.addf %39, %41 : vector<16x128xf32>
    %c0_31 = arith.constant 0 : index
    %c0_32 = arith.constant 0 : index
    %43 = vector.load %arg24[%c0_31, %c0_32] : memref<16x128xf32, #tpu.memory_space<vmem>>, vector<16x128xf32>
    tpu.vector_store %arg24[%c0_31, %c0_32], %42 {strides = array<i32>} : memref<16x128xf32, #tpu.memory_space<vmem>>, vector<16x128xf32>,
    %c0_i32_33 = arith.constant 0 : i32
    %44 = arith.cmpi eq, %arg1, %c0_i32_33 : i32
    %45 = arith.extui %44 : i1 to i32
    %c0_i32_34 = arith.constant 0 : i32
    %46 = arith.cmpi ne, %45, %c0_i32_34 : i32
    scf.if %46 {
      %c0_37 = arith.constant 0 : index
      %c0_38 = arith.constant 0 : index
      %52 = vector.load %arg24[%c0_37, %c0_38] : memref<16x128xf32, #tpu.memory_space<vmem>>, vector<16x128xf32>
      %53 = arith.truncf %52 : vector<16x128xf32> to vector<16x128xbf16>
      %c0_39 = arith.constant 0 : index
      %c0_40 = arith.constant 0 : index
      %c0_41 = arith.constant 0 : index
      %54 = vector.load %arg14[%c0_39, %c0_40, %c0_41] : memref<1x128x128xbf16, #tpu.memory_space<vmem>>, vector<1x128x128xbf16>
      %55 = vector.shape_cast %54 : vector<1x128x128xbf16> to vector<128x128xbf16>
      %cst_42 = arith.constant dense<0.000000e+00> : vector<16x128xf32>
      %56 = tpu.matmul %53, %55, %cst_42 {dimension_numbers = #tpu.dot_dimension_numbers<[1], [0], [0], [1], [0, 0, 1, 1], [], []>} : vector<16x128xbf16>, vector<128x128xbf16>, vector<16x128xf32> -> vector<16x128xf32>
      %c0_43 = arith.constant 0 : index
      %c0_44 = arith.constant 0 : index
      %c0_45 = arith.constant 0 : index
      %57 = vector.load %arg15[%c0_43, %c0_44, %c0_45] : memref<1x1x128xf32, #tpu.memory_space<vmem>>, vector<1x1x128xf32>
      %58 = vector.shape_cast %57 : vector<1x1x128xf32> to vector<1x128xf32>
      %59 = vector.broadcast %58 : vector<1x128xf32> to vector<16x128xf32>
      %60 = arith.addf %56, %59 : vector<16x128xf32>
      %cst_46 = arith.constant 0.000000e+00 : f32
      %61 = vector.broadcast %cst_46 : f32 to vector<16x128xf32>
      %62 = arith.maximumf %60, %61 : vector<16x128xf32>
      %63 = math.absf %60 : vector<16x128xf32>
      %cst_47 = arith.constant 0.000000e+00 : f32
      %64 = vector.broadcast %cst_47 : f32 to vector<16x128xf32>
      %65 = arith.subf %64, %63 : vector<16x128xf32>
      %66 = math.exp %65 : vector<16x128xf32>
      %67 = math.log1p %66 : vector<16x128xf32>
      %68 = arith.addf %62, %67 : vector<16x128xf32>
      %cst_48 = arith.constant 0.693147182 : f32
      %69 = vector.broadcast %cst_48 : f32 to vector<16x128xf32>
      %70 = arith.subf %68, %69 : vector<16x128xf32>
      %71 = arith.truncf %70 : vector<16x128xf32> to vector<16x128xbf16>
      %c0_49 = arith.constant 0 : index
      %c0_50 = arith.constant 0 : index
      %c0_51 = arith.constant 0 : index
      %72 = vector.load %arg16[%c0_49, %c0_50, %c0_51] : memref<1x128x128xbf16, #tpu.memory_space<vmem>>, vector<1x128x128xbf16>
      %73 = vector.shape_cast %72 : vector<1x128x128xbf16> to vector<128x128xbf16>
      %cst_52 = arith.constant dense<0.000000e+00> : vector<16x128xf32>
      %74 = tpu.matmul %71, %73, %cst_52 {dimension_numbers = #tpu.dot_dimension_numbers<[1], [0], [0], [1], [0, 0, 1, 1], [], []>} : vector<16x128xbf16>, vector<128x128xbf16>, vector<16x128xf32> -> vector<16x128xf32>
      %c0_53 = arith.constant 0 : index
      %c0_54 = arith.constant 0 : index
      %c0_55 = arith.constant 0 : index
      %75 = vector.load %arg17[%c0_53, %c0_54, %c0_55] : memref<1x1x128xf32, #tpu.memory_space<vmem>>, vector<1x1x128xf32>
      %76 = vector.shape_cast %75 : vector<1x1x128xf32> to vector<1x128xf32>
      %77 = vector.broadcast %76 : vector<1x128xf32> to vector<16x128xf32>
      %78 = arith.addf %74, %77 : vector<16x128xf32>
      %c0_56 = arith.constant 0 : index
      %c0_57 = arith.constant 0 : index
      %c0_58 = arith.constant 0 : index
      %79 = vector.load %arg18[%c0_56, %c0_57, %c0_58] : memref<1x1x128xf32, #tpu.memory_space<vmem>>, vector<1x1x128xf32>
      %80 = vector.shape_cast %79 : vector<1x1x128xf32> to vector<1x128xf32>
      %81 = vector.broadcast %80 : vector<1x128xf32> to vector<16x128xf32>
      %82 = arith.mulf %78, %81 : vector<16x128xf32>
      %c0_59 = arith.constant 0 : index
      %c0_60 = arith.constant 0 : index
      %c0_61 = arith.constant 0 : index
      %83 = vector.load %arg19[%c0_59, %c0_60, %c0_61] : memref<1x1x128xf32, #tpu.memory_space<vmem>>, vector<1x1x128xf32>
      %84 = vector.shape_cast %83 : vector<1x1x128xf32> to vector<1x128xf32>
      %85 = vector.broadcast %84 : vector<1x128xf32> to vector<16x128xf32>
      %86 = arith.addf %82, %85 : vector<16x128xf32>
      %cst_62 = arith.constant 5.000000e-01 : f32
      %87 = vector.broadcast %cst_62 : f32 to vector<16x128xf32>
      %88 = arith.mulf %87, %86 : vector<16x128xf32>
      %cst_63 = arith.constant 0.707106769 : f32
      %89 = vector.broadcast %cst_63 : f32 to vector<16x128xf32>
      %90 = arith.mulf %86, %89 : vector<16x128xf32>
      %91 = math.erf %90 : vector<16x128xf32>
      %cst_64 = arith.constant 1.000000e+00 : f32
      %92 = vector.broadcast %cst_64 : f32 to vector<16x128xf32>
      %93 = arith.addf %92, %91 : vector<16x128xf32>
      %94 = arith.mulf %88, %93 : vector<16x128xf32>
      %c0_65 = arith.constant 0 : index
      %c0_66 = arith.constant 0 : index
      %95 = vector.load %arg23[%c0_65, %c0_66] : memref<16x128xf32, #tpu.memory_space<vmem>>, vector<16x128xf32>
      %96 = arith.addf %95, %94 : vector<16x128xf32>
      %c0_67 = arith.constant 0 : index
      %c0_68 = arith.constant 0 : index
      %97 = vector.load %arg23[%c0_67, %c0_68] : memref<16x128xf32, #tpu.memory_space<vmem>>, vector<16x128xf32>
      tpu.vector_store %arg23[%c0_67, %c0_68], %96 {strides = array<i32>} : memref<16x128xf32, #tpu.memory_space<vmem>>, vector<16x128xf32>,
    } else {
    }
    %c1_i32 = arith.constant 1 : i32
    %47 = arith.cmpi eq, %arg0, %c1_i32 : i32
    %c0_i32_35 = arith.constant 0 : i32
    %48 = arith.cmpi eq, %arg1, %c0_i32_35 : i32
    %49 = arith.andi %47, %48 : i1
    %50 = arith.extui %49 : i1 to i32
    %c0_i32_36 = arith.constant 0 : i32
    %51 = arith.cmpi ne, %50, %c0_i32_36 : i32
    scf.if %51 {
      %c0_37 = arith.constant 0 : index
      %c0_38 = arith.constant 0 : index
      %52 = vector.load %arg23[%c0_37, %c0_38] : memref<16x128xf32, #tpu.memory_space<vmem>>, vector<16x128xf32>
      %53 = arith.truncf %52 : vector<16x128xf32> to vector<16x128xbf16>
      %c0_39 = arith.constant 0 : index
      %c0_40 = arith.constant 0 : index
      %54 = vector.load %arg20[%c0_39, %c0_40] : memref<128x128xbf16, #tpu.memory_space<vmem>>, vector<128x128xbf16>
      %cst_41 = arith.constant dense<0.000000e+00> : vector<16x128xf32>
      %55 = tpu.matmul %53, %54, %cst_41 {dimension_numbers = #tpu.dot_dimension_numbers<[1], [0], [0], [1], [0, 0, 1, 1], [], []>} : vector<16x128xbf16>, vector<128x128xbf16>, vector<16x128xf32> -> vector<16x128xf32>
      %c0_42 = arith.constant 0 : index
      %c0_43 = arith.constant 0 : index
      %56 = vector.load %arg21[%c0_42, %c0_43] : memref<1x128xf32, #tpu.memory_space<vmem>>, vector<1x128xf32>
      %57 = vector.broadcast %56 : vector<1x128xf32> to vector<16x128xf32>
      %58 = arith.addf %55, %57 : vector<16x128xf32>
      %c0_44 = arith.constant 0 : index
      %c0_45 = arith.constant 0 : index
      %59 = vector.load %arg6[%c0_44, %c0_45] : memref<8x16xbf16, #tpu.memory_space<vmem>>, vector<8x16xbf16>
      %60 = arith.truncf %58 : vector<16x128xf32> to vector<16x128xbf16>
      %cst_46 = arith.constant dense<0.000000e+00> : vector<8x128xf32>
      %61 = tpu.matmul %59, %60, %cst_46 {dimension_numbers = #tpu.dot_dimension_numbers<[1], [0], [0], [1], [0, 0, 1, 1], [], []>} : vector<8x16xbf16>, vector<16x128xbf16>, vector<8x128xf32> -> vector<8x128xf32>
      %c0_47 = arith.constant 0 : index
      %c0_48 = arith.constant 0 : index
      %62 = vector.load %arg22[%c0_47, %c0_48] : memref<8x128xf32, #tpu.memory_space<vmem>>, vector<8x128xf32>
      tpu.vector_store %arg22[%c0_47, %c0_48], %61 {strides = array<i32>} : memref<8x128xf32, #tpu.memory_space<vmem>>, vector<8x128xf32>,
    } else {
    }
    return
  }
  func.func @transform_0(%arg0: i32, %arg1: i32) -> (i32, i32) {
    %c0_i32 = arith.constant 0 : i32
    %c0_i32_0 = arith.constant 0 : i32
    %c0_i32_1 = arith.constant 0 : i32
    return %c0_i32, %c0_i32_0 : i32, i32
  }
  func.func @transform_1(%arg0: i32, %arg1: i32) -> (i32, i32) {
    %c0_i32 = arith.constant 0 : i32
    %c0_i32_0 = arith.constant 0 : i32
    return %arg1, %c0_i32 : i32, i32
  }
  func.func @transform_2(%arg0: i32, %arg1: i32) -> (i32, i32) {
    %c0_i32 = arith.constant 0 : i32
    %c0_i32_0 = arith.constant 0 : i32
    return %arg1, %c0_i32 : i32, i32
  }
  func.func @transform_3(%arg0: i32, %arg1: i32) -> (i32, i32) {
    %c0_i32 = arith.constant 0 : i32
    %c0_i32_0 = arith.constant 0 : i32
    return %c0_i32, %arg1 : i32, i32
  }
  func.func @transform_4(%arg0: i32, %arg1: i32) -> (i32, i32) {
    %c0_i32 = arith.constant 0 : i32
    %c0_i32_0 = arith.constant 0 : i32
    %c0_i32_1 = arith.constant 0 : i32
    return %c0_i32, %c0_i32_0 : i32, i32
  }
  func.func @transform_5(%arg0: i32, %arg1: i32) -> (i32, i32) {
    %c0_i32 = arith.constant 0 : i32
    %c0_i32_0 = arith.constant 0 : i32
    %c0_i32_1 = arith.constant 0 : i32
    return %c0_i32, %c0_i32_0 : i32, i32
  }
  func.func @transform_6(%arg0: i32, %arg1: i32) -> (i32, i32) {
    %c0_i32 = arith.constant 0 : i32
    %c0_i32_0 = arith.constant 0 : i32
    %c0_i32_1 = arith.constant 0 : i32
    return %c0_i32, %c0_i32_0 : i32, i32
  }
  func.func @transform_7(%arg0: i32, %arg1: i32) -> (i32, i32, i32) {
    %c0_i32 = arith.constant 0 : i32
    %c0_i32_0 = arith.constant 0 : i32
    %c0_i32_1 = arith.constant 0 : i32
    return %arg0, %c0_i32, %c0_i32_0 : i32, i32, i32
  }
  func.func @transform_8(%arg0: i32, %arg1: i32) -> (i32, i32, i32) {
    %c0_i32 = arith.constant 0 : i32
    %c0_i32_0 = arith.constant 0 : i32
    %c0_i32_1 = arith.constant 0 : i32
    return %arg0, %c0_i32, %c0_i32_0 : i32, i32, i32
  }
  func.func @transform_9(%arg0: i32, %arg1: i32) -> (i32, i32, i32) {
    %c0_i32 = arith.constant 0 : i32
    %c0_i32_0 = arith.constant 0 : i32
    %c0_i32_1 = arith.constant 0 : i32
    return %arg0, %c0_i32, %c0_i32_0 : i32, i32, i32
  }
  func.func @transform_10(%arg0: i32, %arg1: i32) -> (i32, i32, i32) {
    %c0_i32 = arith.constant 0 : i32
    %c0_i32_0 = arith.constant 0 : i32
    %c0_i32_1 = arith.constant 0 : i32
    return %arg0, %c0_i32, %c0_i32_0 : i32, i32, i32
  }
  func.func @transform_11(%arg0: i32, %arg1: i32) -> (i32, i32, i32) {
    %c0_i32 = arith.constant 0 : i32
    %c0_i32_0 = arith.constant 0 : i32
    %c0_i32_1 = arith.constant 0 : i32
    return %arg0, %c0_i32, %c0_i32_0 : i32, i32, i32
  }
  func.func @transform_12(%arg0: i32, %arg1: i32) -> (i32, i32, i32) {
    %c0_i32 = arith.constant 0 : i32
    %c0_i32_0 = arith.constant 0 : i32
    %c0_i32_1 = arith.constant 0 : i32
    return %arg0, %c0_i32, %c0_i32_0 : i32, i32, i32
  }
  func.func @transform_13(%arg0: i32, %arg1: i32) -> (i32, i32, i32) {
    %c0_i32 = arith.constant 0 : i32
    %c0_i32_0 = arith.constant 0 : i32
    %c0_i32_1 = arith.constant 0 : i32
    return %arg0, %c0_i32, %c0_i32_0 : i32, i32, i32
  }
  func.func @transform_14(%arg0: i32, %arg1: i32) -> (i32, i32, i32) {
    %c0_i32 = arith.constant 0 : i32
    %c0_i32_0 = arith.constant 0 : i32
    %c0_i32_1 = arith.constant 0 : i32
    return %arg0, %c0_i32, %c0_i32_0 : i32, i32, i32
  }
  func.func @transform_15(%arg0: i32, %arg1: i32) -> (i32, i32, i32) {
    %c0_i32 = arith.constant 0 : i32
    %c0_i32_0 = arith.constant 0 : i32
    %c0_i32_1 = arith.constant 0 : i32
    return %arg0, %c0_i32, %c0_i32_0 : i32, i32, i32
  }
  func.func @transform_16(%arg0: i32, %arg1: i32) -> (i32, i32, i32) {
    %c0_i32 = arith.constant 0 : i32
    %c0_i32_0 = arith.constant 0 : i32
    %c0_i32_1 = arith.constant 0 : i32
    return %arg0, %c0_i32, %c0_i32_0 : i32, i32, i32
  }
  func.func @transform_17(%arg0: i32, %arg1: i32) -> (i32, i32, i32) {
    %c0_i32 = arith.constant 0 : i32
    %c0_i32_0 = arith.constant 0 : i32
    %c0_i32_1 = arith.constant 0 : i32
    return %arg0, %c0_i32, %c0_i32_0 : i32, i32, i32
  }
  func.func @transform_18(%arg0: i32, %arg1: i32) -> (i32, i32) {
    %c0_i32 = arith.constant 0 : i32
    %c0_i32_0 = arith.constant 0 : i32
    %c0_i32_1 = arith.constant 0 : i32
    return %c0_i32, %c0_i32_0 : i32, i32
  }
  func.func @transform_19(%arg0: i32, %arg1: i32) -> (i32, i32) {
    %c0_i32 = arith.constant 0 : i32
    %c0_i32_0 = arith.constant 0 : i32
    %c0_i32_1 = arith.constant 0 : i32
    return %c0_i32, %c0_i32_0 : i32, i32
  }
  func.func @transform_20(%arg0: i32, %arg1: i32) -> (i32, i32) {
    %c0_i32 = arith.constant 0 : i32
    %c0_i32_0 = arith.constant 0 : i32
    %c0_i32_1 = arith.constant 0 : i32
    return %c0_i32, %c0_i32_0 : i32, i32
  }
}

</mosaic_0001>

<llo_original>
// kernel: tpu_custom_call.1
$region0: #{tpu_custom_call.1}
  #allocation0 [shape = 'u32[]', space=smem, size = 0x4, offset = 0x4, fixed_abs, tag = 'smem constant byte address 0x4 - core index']
  #allocation1 [shape = 'u32[144,128]{1,0:T(1,128)}', space=vmem, size = 0x12000, scoped, tag = 'internal scratch']
  #allocation2 [shape = 'f32[16,128]{1,0:T(8,128)}', space=vmem, size = 0x2000, scoped, tag = 'scratch operand']
  #allocation3 [shape = 'f32[16,128]{1,0:T(8,128)}', space=vmem, size = 0x2000, scoped, tag = 'scratch operand']
  #allocation4 [shape = 'bf16[16,128]{1,0:T(16,128)(2,1)}', space=vmem, size = 0x1000, scoped, tag = 'scratch operand']
  %s0 = inlined_call_operand.vmem [shape: bf16[16,8], index: 0, kind: input, shape index: {}]
  %s1 = inlined_call_operand.vmem [shape: bf16[128,8], index: 1, kind: input, shape index: {}]
  %s2 = inlined_call_operand.vmem [shape: bf16[128,16], index: 2, kind: input, shape index: {}]
  %s3 = inlined_call_operand.hbm [shape: bf16[16,128], index: 3, kind: input, shape index: {}]
  %s4 = inlined_call_operand.hbm [shape: bf16[8,16], index: 4, kind: input, shape index: {}]
  %s5 = inlined_call_operand.hbm [shape: bf16[8,128], index: 5, kind: input, shape index: {}]
  %s6 = inlined_call_operand.vmem [shape: f32[1,128], index: 6, kind: input, shape index: {}]
  %s7 = inlined_call_operand.hbm [shape: bf16[2,8,128], index: 7, kind: input, shape index: {}]
  %s8 = inlined_call_operand.hbm [shape: f32[2,1,128], index: 8, kind: input, shape index: {}]
  %s9 = inlined_call_operand.vmem [shape: bf16[2,128,128], index: 9, kind: input, shape index: {}]
  %s10 = inlined_call_operand.hbm [shape: f32[2,1,128], index: 10, kind: input, shape index: {}]
  %s11 = inlined_call_operand.hbm [shape: bf16[2,128,128], index: 11, kind: input, shape index: {}]
  %s12 = inlined_call_operand.hbm [shape: bf16[2,128,128], index: 12, kind: input, shape index: {}]
  %s13 = inlined_call_operand.vmem [shape: f32[2,1,128], index: 13, kind: input, shape index: {}]
  %s14 = inlined_call_operand.hbm [shape: bf16[2,128,128], index: 14, kind: input, shape index: {}]
  %s15 = inlined_call_operand.vmem [shape: f32[2,1,128], index: 15, kind: input, shape index: {}]
  %s16 = inlined_call_operand.vmem [shape: f32[2,1,128], index: 16, kind: input, shape index: {}]
  %s17 = inlined_call_operand.vmem [shape: f32[2,1,128], index: 17, kind: input, shape index: {}]
  %s18 = inlined_call_operand.vmem [shape: bf16[128,128], index: 18, kind: input, shape index: {}]
  %s19 = inlined_call_operand.vmem [shape: f32[1,128], index: 19, kind: input, shape index: {}]
  %s20 = inlined_call_operand.hbm [shape: f32[8,128], index: 20, kind: output, shape index: {}]
  %s21 = sld [smem:[#allocation0]]
  $region165: #{tpu_custom_call.1} parent=0
    _
  %s23 = ssub.s32 1, %s21
  %s24 = scalar_select 0, %s23, %s21
  $region1: #{tpu_custom_call.1} parent=0
    #allocation5 [shape = 'u8[4096]{0}', space=vmem, size = 0x1000, scoped, tag = 'input window, operand 3, single buffered']
    #allocation6 [shape = 's32[2]{0}', space=sflag, size = 0x8, scoped, tag = 'scoped memory for tpu_custom_call.1']
    #allocation7 [shape = 's32[2]{0}', space=sflag, size = 0x8, scoped, tag = 'scoped memory for tpu_custom_call.1']
    #allocation8 [shape = 'u8[2048]{0}', space=vmem, size = 0x800, scoped, tag = 'input window, operand 4, single buffered']
    #allocation9 [shape = 's32[1]{0}', space=sflag, size = 0x4, scoped, tag = 'scoped memory for tpu_custom_call.1']
    #allocation10 [shape = 'u8[2048]{0}', space=vmem, size = 0x800, scoped, tag = 'input window, operand 5, single buffered']
    #allocation11 [shape = 'u8[4096]{0}', space=vmem, size = 0x1000, scoped, tag = 'input window, operand 7']
    #allocation12 [shape = 's32[2]{0}', space=sflag, size = 0x8, scoped, tag = 'scoped memory for tpu_custom_call.1']
    #allocation13 [shape = 'u8[1024]{0}', space=vmem, size = 0x400, scoped, tag = 'input window, operand 8']
    #allocation14 [shape = 'u8[1024]{0}', space=vmem, size = 0x400, scoped, tag = 'input window, operand 10']
    #allocation15 [shape = 's32[2]{0}', space=sflag, size = 0x8, scoped, tag = 'scoped memory for tpu_custom_call.1']
    #allocation16 [shape = 'u8[65536]{0}', space=vmem, size = 0x10000, scoped, tag = 'input window, operand 11']
    #allocation17 [shape = 'u8[65536]{0}', space=vmem, size = 0x10000, scoped, tag = 'input window, operand 12']
    #allocation18 [shape = 's32[2]{0}', space=sflag, size = 0x8, scoped, tag = 'scoped memory for tpu_custom_call.1']
    #allocation19 [shape = 'u8[65536]{0}', space=vmem, size = 0x10000, scoped, tag = 'input window, operand 14']
    #allocation20 [shape = 'u8[4096]{0}', space=vmem, size = 0x1000, scoped, tag = 'output window, operand 0, single buffered']
    %25 = vsyncpa [#allocation6], 0
    %26 = vsyncpa [#allocation9], 0
    %27 = vsyncpa [#allocation12], 0
    %s28 = scalar_lea.sflag [#allocation12], 1
    %29 = vsyncpa %s28, 0
    %30 = vsyncpa [#allocation15], 0
    %s31 = scalar_lea.sflag [#allocation15], 1
    %32 = vsyncpa %s31, 0
    %33 = vsyncpa [#allocation18], 0
    %s34 = scalar_lea.sflag [#allocation18], 1
    %35 = vsyncpa %s34, 0
    %36 = vsyncpa [#allocation7], 0
    loop: start=0, step=1, limit=4
    $region2: #{tpu_custom_call.1} parent=1 // loop_pre_header
      _
    $region3: #{tpu_custom_call.1} parent=1 // loop_header
      %s38 = sphi 0, %s42
      %p39 = scmp.ge.s32.totalorder %s38, 4
      %s45 = sphi 0, %s57
      %s46 = sphi 0, %s53
      %s47 = sphi 0, %s45
      %s48 = sphi 0, %s46
      %s49 = sphi 0, %s47
      %s50 = sphi 0, %s48
      %s58 = sphi 0, %s58
      %s60 = sphi 0, %s58
      %s61 = sphi 0, %s60
      %s75 = sphi 0, %s61
      %s81 = sphi 0, %s83
      %s84 = sphi 0, %s81
      %s85 = sphi 0, %s84
      %s101 = sphi 0, %s85
      %s107 = sphi 0, %s109
      %s110 = sphi 0, %s107
      %s111 = sphi 0, %s110
      %s127 = sphi 0, %s111
      %s133 = sphi 0, %s135
      %s136 = sphi 0, %s133
      %s137 = sphi 0, %s136
      %s153 = sphi 0, %s137
      %s157 = sphi 0, %s157
      %s159 = sphi 0, %s157
      %s160 = sphi 0, %s159
      %s174 = sphi 0, %s160
      %s178 = sphi 0, %s178
      %s180 = sphi 0, %s178
      %s181 = sphi 0, %s180
      %s195 = sphi 0, %s181
      %s199 = sphi 0, %s199
      %s201 = sphi 0, %s199
      %s202 = sphi 0, %s201
      %s216 = sphi 0, %s202
      %s222 = sphi 0, %s224
      %s225 = sphi 0, %s222
      %s226 = sphi 0, %s225
      %s242 = sphi 0, %s226
      %s248 = sphi 0, %s250
      %s251 = sphi 0, %s248
      %s252 = sphi 0, %s251
      %s268 = sphi 0, %s252
      %s274 = sphi 0, %s276
      %s277 = sphi 0, %s274
      %s278 = sphi 0, %s277
      %s294 = sphi 0, %s278
      %s300 = sphi 0, %s302
      %s303 = sphi 0, %s300
      %s304 = sphi 0, %s303
      %s320 = sphi 0, %s304
      %s326 = sphi 0, %s328
      %s329 = sphi 0, %s326
      %s330 = sphi 0, %s329
      %s346 = sphi 0, %s330
      %s352 = sphi 0, %s354
      %s355 = sphi 0, %s352
      %s356 = sphi 0, %s355
      %s372 = sphi 0, %s356
      %s378 = sphi 0, %s380
      %s381 = sphi 0, %s378
      %s382 = sphi 0, %s381
      %s398 = sphi 0, %s382
      %s404 = sphi 0, %s406
      %s407 = sphi 0, %s404
      %s408 = sphi 0, %s407
      %s424 = sphi 0, %s408
      %s430 = sphi 0, %s432
      %s433 = sphi 0, %s430
      %s434 = sphi 0, %s433
      %s450 = sphi 0, %s434
      %s456 = sphi 0, %s458
      %s459 = sphi 0, %s456
      %s460 = sphi 0, %s459
      %s476 = sphi 0, %s460
      %s482 = sphi 0, %s484
      %s485 = sphi 0, %s482
      %s486 = sphi 0, %s485
      %s502 = sphi 0, %s486
      %s506 = sphi 0, %s506
      %s508 = sphi 0, %s506
      %s509 = sphi 0, %s508
      %s523 = sphi 0, %s509
      %s527 = sphi 0, %s527
      %s529 = sphi 0, %s527
      %s530 = sphi 0, %s529
      %s544 = sphi 0, %s530
      %s548 = sphi 0, %s548
      %s550 = sphi 0, %s548
      %s551 = sphi 0, %s550
      %s565 = sphi 0, %s551
    $region4: #{tpu_custom_call.1} parent=1 // loop_header_branch
      %41 = sbr.rel (%p39) target = $region8
    $region5: #{tpu_custom_call.1} parent=1 // loop_body
      %s43 = ssub.s32 %s38, 1
      %s44 = ssub.s32 %s38, 2
      %s51 = sadd.s32 1, %s46
      %p52 = scmp.ge.s32.totalorder %s51, 1
      %s53 = scalar_select %p52, 0, %s51
      %s54 = sadd.s32 1, %s45
      %s55 = scalar_select %p52, %s54, %s45
      %p56 = scmp.ge.s32.totalorder %s55, 2
      %s57 = scalar_select %p56, 0, %s55
      %s59 = sadd.s32 %s58, 1
      %p62 = scmp.eq.s32.totalorder %s38, 1
      %p63 = scmp.ne.s32.totalorder %s58, %s60
      %p64 = scmp.eq.s32.totalorder %s38, 0
      %p65 = por %p63, %p64
      %p66 = scmp.ne.s32.totalorder %s58, %s60
      %p67 = scmp.eq.s32.totalorder %s43, 1
      %p68 = por %p66, %p67
      %p69 = scmp.ne.s32.totalorder %s60, %s61
      %p70 = scmp.eq.s32.totalorder %s43, 0
      %p71 = por %p69, %p70
      %p72 = scmp.ne.s32.totalorder %s60, %s61
      %p73 = scmp.eq.s32.totalorder %s44, 1
      %p74 = por %p72, %p73
      %p76 = scmp.ne.s32.totalorder %s61, %s75
      %p77 = scmp.eq.s32.totalorder %s44, 0
      %p78 = por %p76, %p77
      %s79 = ssub.s32 %s46, %s53
      %p80 = scmp.eq.s32.totalorder %s79, 0
      %s82 = sadd.s32 %s81, 1
      %s83 = scalar_select %p80, %s81, %s82
      %p86 = pneg %p80
      %p87 = scmp.eq.s32.totalorder %s38, 1
      %p88 = por %p86, %p87
      %p89 = scmp.ne.s32.totalorder %s81, %s84
      %p90 = scmp.eq.s32.totalorder %s38, 0
      %p91 = por %p89, %p90
      %p92 = scmp.ne.s32.totalorder %s81, %s84
      %p93 = scmp.eq.s32.totalorder %s43, 1
      %p94 = por %p92, %p93
      %p95 = scmp.ne.s32.totalorder %s84, %s85
      %p96 = scmp.eq.s32.totalorder %s43, 0
      %p97 = por %p95, %p96
      %p98 = scmp.ne.s32.totalorder %s84, %s85
      %p99 = scmp.eq.s32.totalorder %s44, 1
      %p100 = por %p98, %p99
      %p102 = scmp.ne.s32.totalorder %s85, %s101
      %p103 = scmp.eq.s32.totalorder %s44, 0
      %p104 = por %p102, %p103
      %s105 = ssub.s32 %s46, %s53
      %p106 = scmp.eq.s32.totalorder %s105, 0
      %s108 = sadd.s32 %s107, 1
      %s109 = scalar_select %p106, %s107, %s108
      %p112 = pneg %p106
      %p113 = scmp.eq.s32.totalorder %s38, 1
      %p114 = por %p112, %p113
      %p115 = scmp.ne.s32.totalorder %s107, %s110
      %p116 = scmp.eq.s32.totalorder %s38, 0
      %p117 = por %p115, %p116
      %p118 = scmp.ne.s32.totalorder %s107, %s110
      %p119 = scmp.eq.s32.totalorder %s43, 1
      %p120 = por %p118, %p119
      %p121 = scmp.ne.s32.totalorder %s110, %s111
      %p122 = scmp.eq.s32.totalorder %s43, 0
      %p123 = por %p121, %p122
      %p124 = scmp.ne.s32.totalorder %s110, %s111
      %p125 = scmp.eq.s32.totalorder %s44, 1
      %p126 = por %p124, %p125
      %p128 = scmp.ne.s32.totalorder %s111, %s127
      %p129 = scmp.eq.s32.totalorder %s44, 0
      %p130 = por %p128, %p129
      %s131 = ssub.s32 %s46, %s53
      %p132 = scmp.eq.s32.totalorder %s131, 0
      %s134 = sadd.s32 %s133, 1
      %s135 = scalar_select %p132, %s133, %s134
      %p138 = pneg %p132
      %p139 = scmp.eq.s32.totalorder %s38, 1
      %p140 = por %p138, %p139
      %p141 = scmp.ne.s32.totalorder %s133, %s136
      %p142 = scmp.eq.s32.totalorder %s38, 0
      %p143 = por %p141, %p142
      %p144 = scmp.ne.s32.totalorder %s133, %s136
      %p145 = scmp.eq.s32.totalorder %s43, 1
      %p146 = por %p144, %p145
      %p147 = scmp.ne.s32.totalorder %s136, %s137
      %p148 = scmp.eq.s32.totalorder %s43, 0
      %p149 = por %p147, %p148
      %p150 = scmp.ne.s32.totalorder %s136, %s137
      %p151 = scmp.eq.s32.totalorder %s44, 1
      %p152 = por %p150, %p151
      %p154 = scmp.ne.s32.totalorder %s137, %s153
      %p155 = scmp.eq.s32.totalorder %s44, 0
      %p156 = por %p154, %p155
      %s158 = sadd.s32 %s157, 1
      %p161 = scmp.eq.s32.totalorder %s38, 1
      %p162 = scmp.ne.s32.totalorder %s157, %s159
      %p163 = scmp.eq.s32.totalorder %s38, 0
      %p164 = por %p162, %p163
      %p165 = scmp.ne.s32.totalorder %s157, %s159
      %p166 = scmp.eq.s32.totalorder %s43, 1
      %p167 = por %p165, %p166
      %p168 = scmp.ne.s32.totalorder %s159, %s160
      %p169 = scmp.eq.s32.totalorder %s43, 0
      %p170 = por %p168, %p169
      %p171 = scmp.ne.s32.totalorder %s159, %s160
      %p172 = scmp.eq.s32.totalorder %s44, 1
      %p173 = por %p171, %p172
      %p175 = scmp.ne.s32.totalorder %s160, %s174
      %p176 = scmp.eq.s32.totalorder %s44, 0
      %p177 = por %p175, %p176
      %s179 = sadd.s32 %s178, 1
      %p182 = scmp.eq.s32.totalorder %s38, 1
      %p183 = scmp.ne.s32.totalorder %s178, %s180
      %p184 = scmp.eq.s32.totalorder %s38, 0
      %p185 = por %p183, %p184
      %p186 = scmp.ne.s32.totalorder %s178, %s180
      %p187 = scmp.eq.s32.totalorder %s43, 1
      %p188 = por %p186, %p187
      %p189 = scmp.ne.s32.totalorder %s180, %s181
      %p190 = scmp.eq.s32.totalorder %s43, 0
      %p191 = por %p189, %p190
      %p192 = scmp.ne.s32.totalorder %s180, %s181
      %p193 = scmp.eq.s32.totalorder %s44, 1
      %p194 = por %p192, %p193
      %p196 = scmp.ne.s32.totalorder %s181, %s195
      %p197 = scmp.eq.s32.totalorder %s44, 0
      %p198 = por %p196, %p197
      %s200 = sadd.s32 %s199, 1
      %p203 = scmp.eq.s32.totalorder %s38, 1
      %p204 = scmp.ne.s32.totalorder %s199, %s201
      %p205 = scmp.eq.s32.totalorder %s38, 0
      %p206 = por %p204, %p205
      %p207 = scmp.ne.s32.totalorder %s199, %s201
      %p208 = scmp.eq.s32.totalorder %s43, 1
      %p209 = por %p207, %p208
      %p210 = scmp.ne.s32.totalorder %s201, %s202
      %p211 = scmp.eq.s32.totalorder %s43, 0
      %p212 = por %p210, %p211
      %p213 = scmp.ne.s32.totalorder %s201, %s202
      %p214 = scmp.eq.s32.totalorder %s44, 1
      %p215 = por %p213, %p214
      %p217 = scmp.ne.s32.totalorder %s202, %s216
      %p218 = scmp.eq.s32.totalorder %s44, 0
      %p219 = por %p217, %p218
      %s220 = ssub.s32 %s45, %s57
      %p221 = scmp.eq.s32.totalorder %s220, 0
      %s223 = sadd.s32 %s222, 1
      %s224 = scalar_select %p221, %s222, %s223
      %p227 = pneg %p221
      %p228 = scmp.eq.s32.totalorder %s38, 1
      %p229 = por %p227, %p228
      %p230 = scmp.ne.s32.totalorder %s222, %s225
      %p231 = scmp.eq.s32.totalorder %s38, 0
      %p232 = por %p230, %p231
      %p233 = scmp.ne.s32.totalorder %s222, %s225
      %p234 = scmp.eq.s32.totalorder %s43, 1
      %p235 = por %p233, %p234
      %p236 = scmp.ne.s32.totalorder %s225, %s226
      %p237 = scmp.eq.s32.totalorder %s43, 0
      %p238 = por %p236, %p237
      %p239 = scmp.ne.s32.totalorder %s225, %s226
      %p240 = scmp.eq.s32.totalorder %s44, 1
      %p241 = por %p239, %p240
      %p243 = scmp.ne.s32.totalorder %s226, %s242
      %p244 = scmp.eq.s32.totalorder %s44, 0
      %p245 = por %p243, %p244
      %s246 = ssub.s32 %s45, %s57
      %p247 = scmp.eq.s32.totalorder %s246, 0
      %s249 = sadd.s32 %s248, 1
      %s250 = scalar_select %p247, %s248, %s249
      %p253 = pneg %p247
      %p254 = scmp.eq.s32.totalorder %s38, 1
      %p255 = por %p253, %p254
      %p256 = scmp.ne.s32.totalorder %s248, %s251
      %p257 = scmp.eq.s32.totalorder %s38, 0
      %p258 = por %p256, %p257
      %p259 = scmp.ne.s32.totalorder %s248, %s251
      %p260 = scmp.eq.s32.totalorder %s43, 1
      %p261 = por %p259, %p260
      %p262 = scmp.ne.s32.totalorder %s251, %s252
      %p263 = scmp.eq.s32.totalorder %s43, 0
      %p264 = por %p262, %p263
      %p265 = scmp.ne.s32.totalorder %s251, %s252
      %p266 = scmp.eq.s32.totalorder %s44, 1
      %p267 = por %p265, %p266
      %p269 = scmp.ne.s32.totalorder %s252, %s268
      %p270 = scmp.eq.s32.totalorder %s44, 0
      %p271 = por %p269, %p270
      %s272 = ssub.s32 %s45, %s57
      %p273 = scmp.eq.s32.totalorder %s272, 0
      %s275 = sadd.s32 %s274, 1
      %s276 = scalar_select %p273, %s274, %s275
      %p279 = pneg %p273
      %p280 = scmp.eq.s32.totalorder %s38, 1
      %p281 = por %p279, %p280
      %p282 = scmp.ne.s32.totalorder %s274, %s277
      %p283 = scmp.eq.s32.totalorder %s38, 0
      %p284 = por %p282, %p283
      %p285 = scmp.ne.s32.totalorder %s274, %s277
      %p286 = scmp.eq.s32.totalorder %s43, 1
      %p287 = por %p285, %p286
      %p288 = scmp.ne.s32.totalorder %s277, %s278
      %p289 = scmp.eq.s32.totalorder %s43, 0
      %p290 = por %p288, %p289
      %p291 = scmp.ne.s32.totalorder %s277, %s278
      %p292 = scmp.eq.s32.totalorder %s44, 1
      %p293 = por %p291, %p292
      %p295 = scmp.ne.s32.totalorder %s278, %s294
      %p296 = scmp.eq.s32.totalorder %s44, 0
      %p297 = por %p295, %p296
      %s298 = ssub.s32 %s45, %s57
      %p299 = scmp.eq.s32.totalorder %s298, 0
      %s301 = sadd.s32 %s300, 1
      %s302 = scalar_select %p299, %s300, %s301
      %p305 = pneg %p299
      %p306 = scmp.eq.s32.totalorder %s38, 1
      %p307 = por %p305, %p306
      %p308 = scmp.ne.s32.totalorder %s300, %s303
      %p309 = scmp.eq.s32.totalorder %s38, 0
      %p310 = por %p308, %p309
      %p311 = scmp.ne.s32.totalorder %s300, %s303
      %p312 = scmp.eq.s32.totalorder %s43, 1
      %p313 = por %p311, %p312
      %p314 = scmp.ne.s32.totalorder %s303, %s304
      %p315 = scmp.eq.s32.totalorder %s43, 0
      %p316 = por %p314, %p315
      %p317 = scmp.ne.s32.totalorder %s303, %s304
      %p318 = scmp.eq.s32.totalorder %s44, 1
      %p319 = por %p317, %p318
      %p321 = scmp.ne.s32.totalorder %s304, %s320
      %p322 = scmp.eq.s32.totalorder %s44, 0
      %p323 = por %p321, %p322
      %s324 = ssub.s32 %s45, %s57
      %p325 = scmp.eq.s32.totalorder %s324, 0
      %s327 = sadd.s32 %s326, 1
      %s328 = scalar_select %p325, %s326, %s327
      %p331 = pneg %p325
      %p332 = scmp.eq.s32.totalorder %s38, 1
      %p333 = por %p331, %p332
      %p334 = scmp.ne.s32.totalorder %s326, %s329
      %p335 = scmp.eq.s32.totalorder %s38, 0
      %p336 = por %p334, %p335
      %p337 = scmp.ne.s32.totalorder %s326, %s329
      %p338 = scmp.eq.s32.totalorder %s43, 1
      %p339 = por %p337, %p338
      %p340 = scmp.ne.s32.totalorder %s329, %s330
      %p341 = scmp.eq.s32.totalorder %s43, 0
      %p342 = por %p340, %p341
      %p343 = scmp.ne.s32.totalorder %s329, %s330
      %p344 = scmp.eq.s32.totalorder %s44, 1
      %p345 = por %p343, %p344
      %p347 = scmp.ne.s32.totalorder %s330, %s346
      %p348 = scmp.eq.s32.totalorder %s44, 0
      %p349 = por %p347, %p348
      %s350 = ssub.s32 %s45, %s57
      %p351 = scmp.eq.s32.totalorder %s350, 0
      %s353 = sadd.s32 %s352, 1
      %s354 = scalar_select %p351, %s352, %s353
      %p357 = pneg %p351
      %p358 = scmp.eq.s32.totalorder %s38, 1
      %p359 = por %p357, %p358
      %p360 = scmp.ne.s32.totalorder %s352, %s355
      %p361 = scmp.eq.s32.totalorder %s38, 0
      %p362 = por %p360, %p361
      %p363 = scmp.ne.s32.totalorder %s352, %s355
      %p364 = scmp.eq.s32.totalorder %s43, 1
      %p365 = por %p363, %p364
      %p366 = scmp.ne.s32.totalorder %s355, %s356
      %p367 = scmp.eq.s32.totalorder %s43, 0
      %p368 = por %p366, %p367
      %p369 = scmp.ne.s32.totalorder %s355, %s356
      %p370 = scmp.eq.s32.totalorder %s44, 1
      %p371 = por %p369, %p370
      %p373 = scmp.ne.s32.totalorder %s356, %s372
      %p374 = scmp.eq.s32.totalorder %s44, 0
      %p375 = por %p373, %p374
      %s376 = ssub.s32 %s45, %s57
      %p377 = scmp.eq.s32.totalorder %s376, 0
      %s379 = sadd.s32 %s378, 1
      %s380 = scalar_select %p377, %s378, %s379
      %p383 = pneg %p377
      %p384 = scmp.eq.s32.totalorder %s38, 1
      %p385 = por %p383, %p384
      %p386 = scmp.ne.s32.totalorder %s378, %s381
      %p387 = scmp.eq.s32.totalorder %s38, 0
      %p388 = por %p386, %p387
      %p389 = scmp.ne.s32.totalorder %s378, %s381
      %p390 = scmp.eq.s32.totalorder %s43, 1
      %p391 = por %p389, %p390
      %p392 = scmp.ne.s32.totalorder %s381, %s382
      %p393 = scmp.eq.s32.totalorder %s43, 0
      %p394 = por %p392, %p393
      %p395 = scmp.ne.s32.totalorder %s381, %s382
      %p396 = scmp.eq.s32.totalorder %s44, 1
      %p397 = por %p395, %p396
      %p399 = scmp.ne.s32.totalorder %s382, %s398
      %p400 = scmp.eq.s32.totalorder %s44, 0
      %p401 = por %p399, %p400
      %s402 = ssub.s32 %s45, %s57
      %p403 = scmp.eq.s32.totalorder %s402, 0
      %s405 = sadd.s32 %s404, 1
      %s406 = scalar_select %p403, %s404, %s405
      %p409 = pneg %p403
      %p410 = scmp.eq.s32.totalorder %s38, 1
      %p411 = por %p409, %p410
      %p412 = scmp.ne.s32.totalorder %s404, %s407
      %p413 = scmp.eq.s32.totalorder %s38, 0
      %p414 = por %p412, %p413
      %p415 = scmp.ne.s32.totalorder %s404, %s407
      %p416 = scmp.eq.s32.totalorder %s43, 1
      %p417 = por %p415, %p416
      %p418 = scmp.ne.s32.totalorder %s407, %s408
      %p419 = scmp.eq.s32.totalorder %s43, 0
      %p420 = por %p418, %p419
      %p421 = scmp.ne.s32.totalorder %s407, %s408
      %p422 = scmp.eq.s32.totalorder %s44, 1
      %p423 = por %p421, %p422
      %p425 = scmp.ne.s32.totalorder %s408, %s424
      %p426 = scmp.eq.s32.totalorder %s44, 0
      %p427 = por %p425, %p426
      %s428 = ssub.s32 %s45, %s57
      %p429 = scmp.eq.s32.totalorder %s428, 0
      %s431 = sadd.s32 %s430, 1
      %s432 = scalar_select %p429, %s430, %s431
      %p435 = pneg %p429
      %p436 = scmp.eq.s32.totalorder %s38, 1
      %p437 = por %p435, %p436
      %p438 = scmp.ne.s32.totalorder %s430, %s433
      %p439 = scmp.eq.s32.totalorder %s38, 0
      %p440 = por %p438, %p439
      %p441 = scmp.ne.s32.totalorder %s430, %s433
      %p442 = scmp.eq.s32.totalorder %s43, 1
      %p443 = por %p441, %p442
      %p444 = scmp.ne.s32.totalorder %s433, %s434
      %p445 = scmp.eq.s32.totalorder %s43, 0
      %p446 = por %p444, %p445
      %p447 = scmp.ne.s32.totalorder %s433, %s434
      %p448 = scmp.eq.s32.totalorder %s44, 1
      %p449 = por %p447, %p448
      %p451 = scmp.ne.s32.totalorder %s434, %s450
      %p452 = scmp.eq.s32.totalorder %s44, 0
      %p453 = por %p451, %p452
      %s454 = ssub.s32 %s45, %s57
      %p455 = scmp.eq.s32.totalorder %s454, 0
      %s457 = sadd.s32 %s456, 1
      %s458 = scalar_select %p455, %s456, %s457
      %p461 = pneg %p455
      %p462 = scmp.eq.s32.totalorder %s38, 1
      %p463 = por %p461, %p462
      %p464 = scmp.ne.s32.totalorder %s456, %s459
      %p465 = scmp.eq.s32.totalorder %s38, 0
      %p466 = por %p464, %p465
      %p467 = scmp.ne.s32.totalorder %s456, %s459
      %p468 = scmp.eq.s32.totalorder %s43, 1
      %p469 = por %p467, %p468
      %p470 = scmp.ne.s32.totalorder %s459, %s460
      %p471 = scmp.eq.s32.totalorder %s43, 0
      %p472 = por %p470, %p471
      %p473 = scmp.ne.s32.totalorder %s459, %s460
      %p474 = scmp.eq.s32.totalorder %s44, 1
      %p475 = por %p473, %p474
      %p477 = scmp.ne.s32.totalorder %s460, %s476
      %p478 = scmp.eq.s32.totalorder %s44, 0
      %p479 = por %p477, %p478
      %s480 = ssub.s32 %s45, %s57
      %p481 = scmp.eq.s32.totalorder %s480, 0
      %s483 = sadd.s32 %s482, 1
      %s484 = scalar_select %p481, %s482, %s483
      %p487 = pneg %p481
      %p488 = scmp.eq.s32.totalorder %s38, 1
      %p489 = por %p487, %p488
      %p490 = scmp.ne.s32.totalorder %s482, %s485
      %p491 = scmp.eq.s32.totalorder %s38, 0
      %p492 = por %p490, %p491
      %p493 = scmp.ne.s32.totalorder %s482, %s485
      %p494 = scmp.eq.s32.totalorder %s43, 1
      %p495 = por %p493, %p494
      %p496 = scmp.ne.s32.totalorder %s485, %s486
      %p497 = scmp.eq.s32.totalorder %s43, 0
      %p498 = por %p496, %p497
      %p499 = scmp.ne.s32.totalorder %s485, %s486
      %p500 = scmp.eq.s32.totalorder %s44, 1
      %p501 = por %p499, %p500
      %p503 = scmp.ne.s32.totalorder %s486, %s502
      %p504 = scmp.eq.s32.totalorder %s44, 0
      %p505 = por %p503, %p504
      %s507 = sadd.s32 %s506, 1
      %p510 = scmp.eq.s32.totalorder %s38, 1
      %p511 = scmp.ne.s32.totalorder %s506, %s508
      %p512 = scmp.eq.s32.totalorder %s38, 0
      %p513 = por %p511, %p512
      %p514 = scmp.ne.s32.totalorder %s506, %s508
      %p515 = scmp.eq.s32.totalorder %s43, 1
      %p516 = por %p514, %p515
      %p517 = scmp.ne.s32.totalorder %s508, %s509
      %p518 = scmp.eq.s32.totalorder %s43, 0
      %p519 = por %p517, %p518
      %p520 = scmp.ne.s32.totalorder %s508, %s509
      %p521 = scmp.eq.s32.totalorder %s44, 1
      %p522 = por %p520, %p521
      %p524 = scmp.ne.s32.totalorder %s509, %s523
      %p525 = scmp.eq.s32.totalorder %s44, 0
      %p526 = por %p524, %p525
      %s528 = sadd.s32 %s527, 1
      %p531 = scmp.eq.s32.totalorder %s38, 1
      %p532 = scmp.ne.s32.totalorder %s527, %s529
      %p533 = scmp.eq.s32.totalorder %s38, 0
      %p534 = por %p532, %p533
      %p535 = scmp.ne.s32.totalorder %s527, %s529
      %p536 = scmp.eq.s32.totalorder %s43, 1
      %p537 = por %p535, %p536
      %p538 = scmp.ne.s32.totalorder %s529, %s530
      %p539 = scmp.eq.s32.totalorder %s43, 0
      %p540 = por %p538, %p539
      %p541 = scmp.ne.s32.totalorder %s529, %s530
      %p542 = scmp.eq.s32.totalorder %s44, 1
      %p543 = por %p541, %p542
      %p545 = scmp.ne.s32.totalorder %s530, %s544
      %p546 = scmp.eq.s32.totalorder %s44, 0
      %p547 = por %p545, %p546
      %s549 = sadd.s32 %s548, 1
      %p552 = scmp.eq.s32.totalorder %s38, 1
      %p553 = scmp.ne.s32.totalorder %s548, %s550
      %p554 = scmp.eq.s32.totalorder %s38, 0
      %p555 = por %p553, %p554
      %p556 = scmp.ne.s32.totalorder %s548, %s550
      %p557 = scmp.eq.s32.totalorder %s43, 1
      %p558 = por %p556, %p557
      %p559 = scmp.ne.s32.totalorder %s550, %s551
      %p560 = scmp.eq.s32.totalorder %s43, 0
      %p561 = por %p559, %p560
      %p562 = scmp.ne.s32.totalorder %s550, %s551
      %p563 = scmp.eq.s32.totalorder %s44, 1
      %p564 = por %p562, %p563
      %p566 = scmp.ne.s32.totalorder %s551, %s565
      %p567 = scmp.eq.s32.totalorder %s44, 0
      %p568 = por %p566, %p567
      %p569 = scmp.le.s32.totalorder 1, %s38
      %p570 = scmp.lt.s32.totalorder %s38, 3
      %p571 = pnand %p569, %p570
      %p572 = pneg %p571
      // Predicated region
      $region9: #{tpu_custom_call.1} parent=5 // pred_check
        _
      $region10: #{tpu_custom_call.1} parent=5 // pred_check_branch
        %574 = sbr.rel (%p571) target = $region12
      $region11: #{tpu_custom_call.1} parent=5 // pred_region
        %s575 = ssub.s32 %s38, 1
        // Predicated region
        $region13: #{tpu_custom_call.1} parent=11 // pred_check
          %p576 = pneg %p71
        $region14: #{tpu_custom_call.1} parent=11 // pred_check_branch
          %578 = sbr.rel (%p576) target = $region16
        $region15: #{tpu_custom_call.1} parent=11 // pred_region
          _
        $region16: #{tpu_custom_call.1} parent=11 // pred_fallthru
          _
        // Predicated region
        $region17: #{tpu_custom_call.1} parent=11 // pred_check
          %p579 = pneg %p97
        $region18: #{tpu_custom_call.1} parent=11 // pred_check_branch
          %581 = sbr.rel (%p579) target = $region20
        $region19: #{tpu_custom_call.1} parent=11 // pred_region
          %s582 = smul.u32 16, %s48
          %p583 = scmp.lt.s32.totalorder %s582, 15
          %s584 = scalar_select %p583, %s582, 15
          %s585 = smul.addr %s584, 4
          %s586 = scalar_lea.vmem %s1, %s585
          %s587 = smul.u32 16, %s48
        $region20: #{tpu_custom_call.1} parent=11 // pred_fallthru
          _
        // Predicated region
        $region21: #{tpu_custom_call.1} parent=11 // pred_check
          %p588 = pneg %p123
        $region22: #{tpu_custom_call.1} parent=11 // pred_check_branch
          %590 = sbr.rel (%p588) target = $region24
        $region23: #{tpu_custom_call.1} parent=11 // pred_region
          %s591 = smul.u32 16, %s48
          %p592 = scmp.lt.s32.totalorder %s591, 15
          %s593 = scalar_select %p592, %s591, 15
          %s594 = smul.addr %s593, 4
          %s595 = scalar_lea.vmem %s2, %s594
          %s596 = smul.u32 16, %s48
        $region24: #{tpu_custom_call.1} parent=11 // pred_fallthru
          _
        // Predicated region
        $region25: #{tpu_custom_call.1} parent=11 // pred_check
          %p597 = pneg %p149
        $region26: #{tpu_custom_call.1} parent=11 // pred_check_branch
          %599 = sbr.rel (%p597) target = $region28
        $region27: #{tpu_custom_call.1} parent=11 // pred_region
          %s601 = ssub.s32 128, 128
          %602 = vsyncadd [#allocation6], %s601
          %s603 = smul.addr %s48, 64
          %s604 = scalar_lea.hbm %s3, %s603
          %s605 = sshll.u32 [#allocation5], 4
          %s606 = int_to_ptr.vmem [resolvable:$true] %s605
          %611 = dma.hbm_to_vmem [thread:$0]  %s604, 128, %s606, [#allocation6], 64, 64, 4
        $region28: #{tpu_custom_call.1} parent=11 // pred_fallthru
          _
        // Predicated region
        $region29: #{tpu_custom_call.1} parent=11 // pred_check
          %p612 = pneg %p170
        $region30: #{tpu_custom_call.1} parent=11 // pred_check_branch
          %614 = sbr.rel (%p612) target = $region32
        $region31: #{tpu_custom_call.1} parent=11 // pred_region
          %s616 = ssub.s32 64, 64
          %617 = vsyncadd [#allocation9], %s616
          %s619 = sshll.u32 [#allocation8], 4
          %s620 = int_to_ptr.vmem [resolvable:$true] %s619
          %622 = dma.hbm_to_vmem [thread:$0]  %s4, 64, %s620, [#allocation9]
        $region32: #{tpu_custom_call.1} parent=11 // pred_fallthru
          _
        // Predicated region
        $region33: #{tpu_custom_call.1} parent=11 // pred_check
          %p623 = pneg %p191
        $region34: #{tpu_custom_call.1} parent=11 // pred_check_branch
          %625 = sbr.rel (%p623) target = $region36
        $region35: #{tpu_custom_call.1} parent=11 // pred_region
          %s627 = ssub.s32 64, 64
          %628 = vsyncadd [#allocation9], %s627
          %s630 = sshll.u32 [#allocation10], 4
          %s631 = int_to_ptr.vmem [resolvable:$true] %s630
          %633 = dma.hbm_to_vmem [thread:$0]  %s5, 64, %s631, [#allocation9]
        $region36: #{tpu_custom_call.1} parent=11 // pred_fallthru
          _
        // Predicated region
        $region37: #{tpu_custom_call.1} parent=11 // pred_check
          %p634 = pneg %p212
        $region38: #{tpu_custom_call.1} parent=11 // pred_check_branch
          %636 = sbr.rel (%p634) target = $region40
        $region39: #{tpu_custom_call.1} parent=11 // pred_region
          _
        $region40: #{tpu_custom_call.1} parent=11 // pred_fallthru
          _
        // Predicated region
        $region41: #{tpu_custom_call.1} parent=11 // pred_check
          %p637 = pneg %p519
        $region42: #{tpu_custom_call.1} parent=11 // pred_check_branch
          %639 = sbr.rel (%p637) target = $region44
        $region43: #{tpu_custom_call.1} parent=11 // pred_region
          _
        $region44: #{tpu_custom_call.1} parent=11 // pred_fallthru
          _
        // Predicated region
        $region45: #{tpu_custom_call.1} parent=11 // pred_check
          %p640 = pneg %p540
        $region46: #{tpu_custom_call.1} parent=11 // pred_check_branch
          %642 = sbr.rel (%p640) target = $region48
        $region47: #{tpu_custom_call.1} parent=11 // pred_region
          _
        $region48: #{tpu_custom_call.1} parent=11 // pred_fallthru
          _
      $region12: #{tpu_custom_call.1} parent=5 // pred_fallthru
        _
      %p643 = scmp.lt.s32.totalorder %s38, 2
      // Predicated region
      $region49: #{tpu_custom_call.1} parent=5 // pred_check
        %p644 = pneg %p643
      $region50: #{tpu_custom_call.1} parent=5 // pred_check_branch
        %646 = sbr.rel (%p644) target = $region52
      $region51: #{tpu_custom_call.1} parent=5 // pred_region
        // Predicated region
        $region53: #{tpu_custom_call.1} parent=51 // pred_check
          %p647 = pneg %p232
        $region54: #{tpu_custom_call.1} parent=51 // pred_check_branch
          %649 = sbr.rel (%p647) target = $region56
        $region55: #{tpu_custom_call.1} parent=51 // pred_region
          %s650 = sand.u32 %s38, 1
          %s651 = scalar_lea.sflag [#allocation12], %s650
          %s652 = sand.u32 %s222, 1
          %s653 = smul.addr %s652, 4
          %s654 = scalar_lea.vmem [#allocation11], %s653
          %s656 = ssub.s32 64, 64
          %657 = vsyncadd %s651, %s656
          %s658 = smul.addr %s45, 64
          %s659 = scalar_lea.hbm %s7, %s658
          %s661 = sshll.u32 %s654, 4
          %s662 = int_to_ptr.vmem [resolvable:$true] %s661
          %664 = dma.hbm_to_vmem [thread:$0]  %s659, 64, %s662, %s651
        $region56: #{tpu_custom_call.1} parent=51 // pred_fallthru
          _
        // Predicated region
        $region57: #{tpu_custom_call.1} parent=51 // pred_check
          %p665 = pneg %p258
        $region58: #{tpu_custom_call.1} parent=51 // pred_check_branch
          %667 = sbr.rel (%p665) target = $region60
        $region59: #{tpu_custom_call.1} parent=51 // pred_region
          %s668 = sand.u32 %s38, 1
          %s669 = scalar_lea.sflag [#allocation12], %s668
          %s670 = sand.u32 %s248, 1
          %s671 = scalar_lea.vmem [#allocation13], %s670
          %s673 = ssub.s32 16, 16
          %674 = vsyncadd %s669, %s673
          %s675 = smul.addr %s45, 16
          %s676 = scalar_lea.hbm %s8, %s675
          %s678 = sshll.u32 %s671, 4
          %s679 = int_to_ptr.vmem [resolvable:$true] %s678
          %681 = dma.hbm_to_vmem [thread:$0]  %s676, 16, %s679, %s669
        $region60: #{tpu_custom_call.1} parent=51 // pred_fallthru
          _
        // Predicated region
        $region61: #{tpu_custom_call.1} parent=51 // pred_check
          %p682 = pneg %p284
        $region62: #{tpu_custom_call.1} parent=51 // pred_check_branch
          %684 = sbr.rel (%p682) target = $region64
        $region63: #{tpu_custom_call.1} parent=51 // pred_region
          %p685 = scmp.lt.s32.totalorder %s45, 1
          %s686 = scalar_select %p685, %s45, 1
          %s687 = smul.addr %s686, 16
          %s688 = smul.addr %s687, 4
          %s689 = scalar_lea.vmem %s9, %s688
        $region64: #{tpu_custom_call.1} parent=51 // pred_fallthru
          _
        // Predicated region
        $region65: #{tpu_custom_call.1} parent=51 // pred_check
          %p690 = pneg %p310
        $region66: #{tpu_custom_call.1} parent=51 // pred_check_branch
          %692 = sbr.rel (%p690) target = $region68
        $region67: #{tpu_custom_call.1} parent=51 // pred_region
          %s693 = sand.u32 %s38, 1
          %s694 = scalar_lea.sflag [#allocation15], %s693
          %s695 = sand.u32 %s300, 1
          %s696 = scalar_lea.vmem [#allocation14], %s695
          %s698 = ssub.s32 16, 16
          %699 = vsyncadd %s694, %s698
          %s700 = smul.addr %s45, 16
          %s701 = scalar_lea.hbm %s10, %s700
          %s703 = sshll.u32 %s696, 4
          %s704 = int_to_ptr.vmem [resolvable:$true] %s703
          %706 = dma.hbm_to_vmem [thread:$0]  %s701, 16, %s704, %s694
        $region68: #{tpu_custom_call.1} parent=51 // pred_fallthru
          _
        // Predicated region
        $region69: #{tpu_custom_call.1} parent=51 // pred_check
          %p707 = pneg %p336
        $region70: #{tpu_custom_call.1} parent=51 // pred_check_branch
          %709 = sbr.rel (%p707) target = $region72
        $region71: #{tpu_custom_call.1} parent=51 // pred_region
          %s710 = sand.u32 %s38, 1
          %s711 = scalar_lea.sflag [#allocation15], %s710
          %s712 = sand.u32 %s326, 1
          %s713 = smul.addr %s712, 64
          %s714 = scalar_lea.vmem [#allocation16], %s713
          %s716 = ssub.s32 1024, 1024
          %717 = vsyncadd %s711, %s716
          %s718 = smul.addr %s45, 16
          %s719 = smul.addr %s718, 64
          %s720 = scalar_lea.hbm %s11, %s719
          %s721 = sshll.u32 %s714, 4
          %s722 = int_to_ptr.vmem [resolvable:$true] %s721
          %727 = dma.hbm_to_vmem [thread:$0]  %s720, 1024, %s722, %s711, 64, 64, 4
        $region72: #{tpu_custom_call.1} parent=51 // pred_fallthru
          _
        // Predicated region
        $region73: #{tpu_custom_call.1} parent=51 // pred_check
          %p728 = pneg %p362
        $region74: #{tpu_custom_call.1} parent=51 // pred_check_branch
          %730 = sbr.rel (%p728) target = $region76
        $region75: #{tpu_custom_call.1} parent=51 // pred_region
          %s731 = sand.u32 %s38, 1
          %s732 = scalar_lea.sflag [#allocation18], %s731
          %s733 = sand.u32 %s352, 1
          %s734 = smul.addr %s733, 64
          %s735 = scalar_lea.vmem [#allocation17], %s734
          %s737 = ssub.s32 1024, 1024
          %738 = vsyncadd %s732, %s737
          %s739 = smul.addr %s45, 16
          %s740 = smul.addr %s739, 64
          %s741 = scalar_lea.hbm %s12, %s740
          %s742 = sshll.u32 %s735, 4
          %s743 = int_to_ptr.vmem [resolvable:$true] %s742
          %748 = dma.hbm_to_vmem [thread:$0]  %s741, 1024, %s743, %s732, 64, 64, 4
        $region76: #{tpu_custom_call.1} parent=51 // pred_fallthru
          _
        // Predicated region
        $region77: #{tpu_custom_call.1} parent=51 // pred_check
          %p749 = pneg %p388
        $region78: #{tpu_custom_call.1} parent=51 // pred_check_branch
          %751 = sbr.rel (%p749) target = $region80
        $region79: #{tpu_custom_call.1} parent=51 // pred_region
          %p752 = scmp.lt.s32.totalorder %s45, 1
          %s753 = scalar_select %p752, %s45, 1
          %s754 = scalar_lea.vmem %s13, %s753
        $region80: #{tpu_custom_call.1} parent=51 // pred_fallthru
          _
        // Predicated region
        $region81: #{tpu_custom_call.1} parent=51 // pred_check
          %p755 = pneg %p414
        $region82: #{tpu_custom_call.1} parent=51 // pred_check_branch
          %757 = sbr.rel (%p755) target = $region84
        $region83: #{tpu_custom_call.1} parent=51 // pred_region
          %s758 = sand.u32 %s38, 1
          %s759 = scalar_lea.sflag [#allocation18], %s758
          %s760 = sand.u32 %s404, 1
          %s761 = smul.addr %s760, 64
          %s762 = scalar_lea.vmem [#allocation19], %s761
          %s764 = ssub.s32 1024, 1024
          %765 = vsyncadd %s759, %s764
          %s766 = smul.addr %s45, 16
          %s767 = smul.addr %s766, 64
          %s768 = scalar_lea.hbm %s14, %s767
          %s769 = sshll.u32 %s762, 4
          %s770 = int_to_ptr.vmem [resolvable:$true] %s769
          %775 = dma.hbm_to_vmem [thread:$0]  %s768, 1024, %s770, %s759, 64, 64, 4
        $region84: #{tpu_custom_call.1} parent=51 // pred_fallthru
          _
        // Predicated region
        $region85: #{tpu_custom_call.1} parent=51 // pred_check
          %p776 = pneg %p440
        $region86: #{tpu_custom_call.1} parent=51 // pred_check_branch
          %778 = sbr.rel (%p776) target = $region88
        $region87: #{tpu_custom_call.1} parent=51 // pred_region
          %p779 = scmp.lt.s32.totalorder %s45, 1
          %s780 = scalar_select %p779, %s45, 1
          %s781 = scalar_lea.vmem %s15, %s780
        $region88: #{tpu_custom_call.1} parent=51 // pred_fallthru
          _
        // Predicated region
        $region89: #{tpu_custom_call.1} parent=51 // pred_check
          %p782 = pneg %p466
        $region90: #{tpu_custom_call.1} parent=51 // pred_check_branch
          %784 = sbr.rel (%p782) target = $region92
        $region91: #{tpu_custom_call.1} parent=51 // pred_region
          %p785 = scmp.lt.s32.totalorder %s45, 1
          %s786 = scalar_select %p785, %s45, 1
          %s787 = scalar_lea.vmem %s16, %s786
        $region92: #{tpu_custom_call.1} parent=51 // pred_fallthru
          _
        // Predicated region
        $region93: #{tpu_custom_call.1} parent=51 // pred_check
          %p788 = pneg %p492
        $region94: #{tpu_custom_call.1} parent=51 // pred_check_branch
          %790 = sbr.rel (%p788) target = $region96
        $region95: #{tpu_custom_call.1} parent=51 // pred_region
          %p791 = scmp.lt.s32.totalorder %s45, 1
          %s792 = scalar_select %p791, %s45, 1
          %s793 = scalar_lea.vmem %s17, %s792
        $region96: #{tpu_custom_call.1} parent=51 // pred_fallthru
          _
      $region52: #{tpu_custom_call.1} parent=5 // pred_fallthru
        _
      %p794 = scmp.le.s32.totalorder 1, %s38
      %p795 = scmp.lt.s32.totalorder %s38, 3
      %p796 = pnand %p794, %p795
      %p797 = pneg %p796
      // Predicated region
      $region97: #{tpu_custom_call.1} parent=5 // pred_check
        _
      $region98: #{tpu_custom_call.1} parent=5 // pred_check_branch
        %799 = sbr.rel (%p796) target = $region100
      $region99: #{tpu_custom_call.1} parent=5 // pred_region
        %s800 = ssub.s32 %s38, 1
        // Predicated region
        $region101: #{tpu_custom_call.1} parent=99 // pred_check
          %p801 = pneg %p149
        $region102: #{tpu_custom_call.1} parent=99 // pred_check_branch
          %803 = sbr.rel (%p801) target = $region104
        $region103: #{tpu_custom_call.1} parent=99 // pred_region
          %804 = dma.done [#allocation6], 128
        $region104: #{tpu_custom_call.1} parent=99 // pred_fallthru
          _
        // Predicated region
        $region105: #{tpu_custom_call.1} parent=99 // pred_check
          %p805 = pneg %p170
        $region106: #{tpu_custom_call.1} parent=99 // pred_check_branch
          %807 = sbr.rel (%p805) target = $region108
        $region107: #{tpu_custom_call.1} parent=99 // pred_region
          %808 = dma.done [#allocation9], 64
        $region108: #{tpu_custom_call.1} parent=99 // pred_fallthru
          _
        // Predicated region
        $region109: #{tpu_custom_call.1} parent=99 // pred_check
          %p809 = pneg %p191
        $region110: #{tpu_custom_call.1} parent=99 // pred_check_branch
          %811 = sbr.rel (%p809) target = $region112
        $region111: #{tpu_custom_call.1} parent=99 // pred_region
          %812 = dma.done [#allocation9], 64
        $region112: #{tpu_custom_call.1} parent=99 // pred_fallthru
          _
        %s813 = sand.u32 %s43, 1
        %s814 = scalar_lea.sflag [#allocation12], %s813
        %s815 = sand.u32 %s225, 1
        %s816 = smul.addr %s815, 4
        %s817 = scalar_lea.vmem [#allocation11], %s816
        // Predicated region
        $region113: #{tpu_custom_call.1} parent=99 // pred_check
          %p818 = pneg %p238
        $region114: #{tpu_custom_call.1} parent=99 // pred_check_branch
          %820 = sbr.rel (%p818) target = $region116
        $region115: #{tpu_custom_call.1} parent=99 // pred_region
          %821 = dma.done %s814, 64
        $region116: #{tpu_custom_call.1} parent=99 // pred_fallthru
          _
        %s822 = sand.u32 %s43, 1
        %s823 = scalar_lea.sflag [#allocation12], %s822
        %s824 = sand.u32 %s251, 1
        %s825 = scalar_lea.vmem [#allocation13], %s824
        // Predicated region
        $region117: #{tpu_custom_call.1} parent=99 // pred_check
          %p826 = pneg %p264
        $region118: #{tpu_custom_call.1} parent=99 // pred_check_branch
          %828 = sbr.rel (%p826) target = $region120
        $region119: #{tpu_custom_call.1} parent=99 // pred_region
          %829 = dma.done %s823, 16
        $region120: #{tpu_custom_call.1} parent=99 // pred_fallthru
          _
        %s830 = sand.u32 %s43, 1
        %s831 = scalar_lea.sflag [#allocation15], %s830
        %s832 = sand.u32 %s303, 1
        %s833 = scalar_lea.vmem [#allocation14], %s832
        // Predicated region
        $region121: #{tpu_custom_call.1} parent=99 // pred_check
          %p834 = pneg %p316
        $region122: #{tpu_custom_call.1} parent=99 // pred_check_branch
          %836 = sbr.rel (%p834) target = $region124
        $region123: #{tpu_custom_call.1} parent=99 // pred_region
          %837 = dma.done %s831, 16
        $region124: #{tpu_custom_call.1} parent=99 // pred_fallthru
          _
        %s838 = sand.u32 %s43, 1
        %s839 = scalar_lea.sflag [#allocation15], %s838
        %s840 = sand.u32 %s329, 1
        %s841 = smul.addr %s840, 64
        %s842 = scalar_lea.vmem [#allocation16], %s841
        // Predicated region
        $region125: #{tpu_custom_call.1} parent=99 // pred_check
          %p843 = pneg %p342
        $region126: #{tpu_custom_call.1} parent=99 // pred_check_branch
          %845 = sbr.rel (%p843) target = $region128
        $region127: #{tpu_custom_call.1} parent=99 // pred_region
          %846 = dma.done %s839, 1024
        $region128: #{tpu_custom_call.1} parent=99 // pred_fallthru
          _
        %s847 = sand.u32 %s43, 1
        %s848 = scalar_lea.sflag [#allocation18], %s847
        %s849 = sand.u32 %s355, 1
        %s850 = smul.addr %s849, 64
        %s851 = scalar_lea.vmem [#allocation17], %s850
        // Predicated region
        $region129: #{tpu_custom_call.1} parent=99 // pred_check
          %p852 = pneg %p368
        $region130: #{tpu_custom_call.1} parent=99 // pred_check_branch
          %854 = sbr.rel (%p852) target = $region132
        $region131: #{tpu_custom_call.1} parent=99 // pred_region
          %855 = dma.done %s848, 1024
        $region132: #{tpu_custom_call.1} parent=99 // pred_fallthru
          _
        %s856 = sand.u32 %s43, 1
        %s857 = scalar_lea.sflag [#allocation18], %s856
        %s858 = sand.u32 %s407, 1
        %s859 = smul.addr %s858, 64
        %s860 = scalar_lea.vmem [#allocation19], %s859
        // Predicated region
        $region133: #{tpu_custom_call.1} parent=99 // pred_check
          %p861 = pneg %p420
        $region134: #{tpu_custom_call.1} parent=99 // pred_check_branch
          %863 = sbr.rel (%p861) target = $region136
        $region135: #{tpu_custom_call.1} parent=99 // pred_region
          %864 = dma.done %s857, 1024
        $region136: #{tpu_custom_call.1} parent=99 // pred_fallthru
          _
        %p865 = pneg %p71
        %p866 = pneg %p68
        %s867 = smul.u32 16, %s48
        %p868 = scmp.lt.s32.totalorder %s867, 15
        %s869 = scalar_select %p868, %s867, 15
        %s870 = smul.addr %s869, 4
        %s871 = scalar_lea.vmem %s1, %s870
        %p872 = pneg %p97
        %p873 = pneg %p94
        %s874 = smul.u32 16, %s48
        %p875 = scmp.lt.s32.totalorder %s874, 15
        %s876 = scalar_select %p875, %s874, 15
        %s877 = smul.addr %s876, 4
        %s878 = scalar_lea.vmem %s2, %s877
        %p879 = pneg %p123
        %p880 = pneg %p120
        %p881 = pneg %p149
        %p882 = pneg %p146
        %p883 = pneg %p170
        %p884 = pneg %p167
        %p885 = pneg %p191
        %p886 = pneg %p188
        %p887 = pneg %p212
        %p888 = pneg %p209
        %s889 = sand.u32 %s43, 1
        %s890 = scalar_lea.sflag [#allocation12], %s889
        %s891 = sand.u32 %s225, 1
        %s892 = smul.addr %s891, 4
        %s893 = scalar_lea.vmem [#allocation11], %s892
        %p894 = pneg %p238
        %p895 = pneg %p235
        %s896 = sand.u32 %s43, 1
        %s897 = scalar_lea.sflag [#allocation12], %s896
        %s898 = sand.u32 %s251, 1
        %s899 = scalar_lea.vmem [#allocation13], %s898
        %p900 = pneg %p264
        %p901 = pneg %p261
        %p902 = scmp.lt.s32.totalorder %s47, 1
        %s903 = scalar_select %p902, %s47, 1
        %s904 = smul.addr %s903, 16
        %s905 = smul.addr %s904, 4
        %s906 = scalar_lea.vmem %s9, %s905
        %p907 = pneg %p290
        %p908 = pneg %p287
        %s909 = sand.u32 %s43, 1
        %s910 = scalar_lea.sflag [#allocation15], %s909
        %s911 = sand.u32 %s303, 1
        %s912 = scalar_lea.vmem [#allocation14], %s911
        %p913 = pneg %p316
        %p914 = pneg %p313
        %s915 = sand.u32 %s43, 1
        %s916 = scalar_lea.sflag [#allocation15], %s915
        %s917 = sand.u32 %s329, 1
        %s918 = smul.addr %s917, 64
        %s919 = scalar_lea.vmem [#allocation16], %s918
        %p920 = pneg %p342
        %p921 = pneg %p339
        %s922 = sand.u32 %s43, 1
        %s923 = scalar_lea.sflag [#allocation18], %s922
        %s924 = sand.u32 %s355, 1
        %s925 = smul.addr %s924, 64
        %s926 = scalar_lea.vmem [#allocation17], %s925
        %p927 = pneg %p368
        %p928 = pneg %p365
        %p929 = scmp.lt.s32.totalorder %s47, 1
        %s930 = scalar_select %p929, %s47, 1
        %s931 = scalar_lea.vmem %s13, %s930
        %p932 = pneg %p394
        %p933 = pneg %p391
        %s934 = sand.u32 %s43, 1
        %s935 = scalar_lea.sflag [#allocation18], %s934
        %s936 = sand.u32 %s407, 1
        %s937 = smul.addr %s936, 64
        %s938 = scalar_lea.vmem [#allocation19], %s937
        %p939 = pneg %p420
        %p940 = pneg %p417
        %p941 = scmp.lt.s32.totalorder %s47, 1
        %s942 = scalar_select %p941, %s47, 1
        %s943 = scalar_lea.vmem %s15, %s942
        %p944 = pneg %p446
        %p945 = pneg %p443
        %p946 = scmp.lt.s32.totalorder %s47, 1
        %s947 = scalar_select %p946, %s47, 1
        %s948 = scalar_lea.vmem %s16, %s947
        %p949 = pneg %p472
        %p950 = pneg %p469
        %p951 = scmp.lt.s32.totalorder %s47, 1
        %s952 = scalar_select %p951, %s47, 1
        %s953 = scalar_lea.vmem %s17, %s952
        %p954 = pneg %p498
        %p955 = pneg %p495
        %p956 = pneg %p519
        %p957 = pneg %p516
        %p958 = pneg %p540
        %p959 = pneg %p537
        %p960 = pneg %p561
        %p961 = pneg %p558
        %s962 = smul.u32 16, %s48
        %p963 = scmp.lt.s32.totalorder %s962, 15
        %s964 = scalar_select %p963, %s962, 15
        %s965 = smul.addr %s964, 4
        %s966 = scalar_lea.vmem %s1, %s965
        %s967 = smul.u32 16, %s48
        %s968 = smul.u32 16, %s48
        %p969 = scmp.lt.s32.totalorder %s968, 15
        %s970 = scalar_select %p969, %s968, 15
        %s971 = smul.addr %s970, 4
        %s972 = scalar_lea.vmem %s2, %s971
        %s973 = smul.u32 16, %s48
        %p974 = scmp.lt.s32.totalorder %s47, 1
        %s975 = scalar_select %p974, %s47, 1
        %s976 = smul.addr %s975, 16
        %s977 = smul.addr %s976, 4
        %s978 = scalar_lea.vmem %s9, %s977
        %p979 = scmp.lt.s32.totalorder %s47, 1
        %s980 = scalar_select %p979, %s47, 1
        %s981 = scalar_lea.vmem %s13, %s980
        %p982 = scmp.lt.s32.totalorder %s47, 1
        %s983 = scalar_select %p982, %s47, 1
        %s984 = scalar_lea.vmem %s15, %s983
        %p985 = scmp.lt.s32.totalorder %s47, 1
        %s986 = scalar_select %p985, %s47, 1
        %s987 = scalar_lea.vmem %s16, %s986
        %p988 = scmp.lt.s32.totalorder %s47, 1
        %s989 = scalar_select %p988, %s47, 1
        %s990 = scalar_lea.vmem %s17, %s989
        %p992 = scmp.eq.s32.totalorder %s47, 0
        %p993 = scmp.eq.s32.totalorder %s48, 0
        %p994 = pnand %p992, %p993
        %p995 = pneg %p994
        // Predicated region
        $region137: #{tpu_custom_call.1} parent=99 // pred_check
          _
        $region138: #{tpu_custom_call.1} parent=99 // pred_check_branch
          %997 = sbr.rel (%p994) target = $region140
        $region139: #{tpu_custom_call.1} parent=99 // pred_region
          %v998 = vld [vmem:[%s0] sm:$0xf]
          %v999 = vld [vmem:[%s0 + $0x4] sm:$0xf]
          %v1000 = vld [vmem:[#allocation10] sm:$0xf]
          %v1001 = vld [vmem:[%s6] sm:$0x1]
          %v1003 = vlaneseq
          %v1004 = vshrl.u32 %v1003, 7
          %v1005 = vsub.s32 0, %v1004
          %v1006 = vrot.slane %v1001, %v1005
          %v1010 = vunpack.c.l.b16 %v998
          %v1011 = vunpack.c.l.b16 %v999
          %v1012 = vpack.c.b16 %v1011, %v1010
          %vm1013 = vcmask 64512
          %v1015 = vsel %vm1013, %v1012, 0
          %vm1017 = vcmask 1043456
          %v1019 = vsel %vm1017, %v1000, 0
          %1021 = vmatprep.subr.bf16.mxu0 0
          %1022 = vmatpush1.bf16.msra.mxu0 %v1019
          %1023 = vmatprep.subr.bf16.mxu0 0
          %1024 = vmatpush1.bf16.msra.mxu0 0
          %1025 = vmatprep.subr.bf16.mxu0 0
          %1026 = vmatpush1.bf16.msra.mxu0 0
          %1027 = vmatprep.subr.bf16.mxu0 0
          %1028 = vmatpush1.bf16.msra.mxu0 0
          %1029 = vmatprep.subr.bf16.mxu0 0
          %1030 = vmatpush1.bf16.msra.mxu0 0
          %1031 = vmatprep.subr.bf16.mxu0 0
          %1032 = vmatpush1.bf16.msra.mxu0 0
          %1033 = vmatprep.subr.bf16.mxu0 0
          %1034 = vmatpush1.bf16.msra.mxu0 0
          %1035 = vmatprep.subr.bf16.mxu0 0
          %1036 = vmatpush1.bf16.msra.mxu0 0
          %1037 = vmatprep.subr.bf16.mxu0 0
          %1038 = vmatpush1.bf16.msra.mxu0 0
          %1039 = vmatprep.subr.bf16.mxu0 0
          %1040 = vmatpush1.bf16.msra.mxu0 0
          %1041 = vmatprep.subr.bf16.mxu0 0
          %1042 = vmatpush1.bf16.msra.mxu0 0
          %1043 = vmatprep.subr.bf16.mxu0 0
          %1044 = vmatpush1.bf16.msra.mxu0 0
          %1045 = vmatprep.subr.bf16.mxu0 0
          %1046 = vmatpush1.bf16.msra.mxu0 0
          %1047 = vmatprep.subr.bf16.mxu0 0
          %1048 = vmatpush1.bf16.msra.mxu0 0
          %1049 = vmatprep.subr.bf16.mxu0 0
          %1050 = vmatpush1.bf16.msra.mxu0 0
          %1051 = vmatprep.subr.bf16.mxu0 0
          %1052 = vmatpush1.bf16.msra.mxu0 0
          %1053 = vmatprep.mubr.bf16.mxu0 0
          %1054 = vmatmul.mubr.bf16.gmra.mrb[0].mxu0 %v1015
          %v1055 = vpop.f32.mrb[0].mxu0
          %v1056 = vadd.f32 %v1006, %v1055
          %v1057 = vpop.f32.mrb[0].mxu0
          %v1058 = vpop.f32.mrb[0].mxu0
          %v1059 = vadd.f32 %v1006, %v1058
          %v1060 = vpop.f32.mrb[0].mxu0
          %1061 = vdwg.mxu0
          %1062 = vst [vmem:[#allocation2] sm:$0xff] %v1056
          %1063 = vst [vmem:[#allocation2 + $0x8] sm:$0xff] %v1059
        $region140: #{tpu_custom_call.1} parent=99 // pred_fallthru
          _
        // Predicated region
        $region141: #{tpu_custom_call.1} parent=99 // pred_check
          %p1064 = pneg %p993
        $region142: #{tpu_custom_call.1} parent=99 // pred_check_branch
          %1066 = sbr.rel (%p1064) target = $region144
        $region143: #{tpu_custom_call.1} parent=99 // pred_region
          %1067 = vst [vmem:[#allocation3] sm:$0xff] 0.0
          %1068 = vst [vmem:[#allocation3 + $0x8] sm:$0xff] 0.0
          %v1069 = vld [vmem:[#allocation2] sm:$0xff]
          %v1070 = vld [vmem:[#allocation2 + $0x8] sm:$0xff]
          %v1071 = vpack.c.bf16 %v1070, %v1069
          %v1072 = vld [vmem:[%s842] sm:$0xf]
          %v1073 = vld [vmem:[%s842 + $0x4] sm:$0xf]
          %v1074 = vld [vmem:[%s842 + $0x8] sm:$0xf]
          %v1075 = vld [vmem:[%s842 + $0xc] sm:$0xf]
          %v1076 = vld [vmem:[%s842 + $0x10] sm:$0xf]
          %v1077 = vld [vmem:[%s842 + $0x14] sm:$0xf]
          %v1078 = vld [vmem:[%s842 + $0x18] sm:$0xf]
          %v1079 = vld [vmem:[%s842 + $0x1c] sm:$0xf]
          %v1080 = vld [vmem:[%s842 + $0x20] sm:$0xf]
          %v1081 = vld [vmem:[%s842 + $0x24] sm:$0xf]
          %v1082 = vld [vmem:[%s842 + $0x28] sm:$0xf]
          %v1083 = vld [vmem:[%s842 + $0x2c] sm:$0xf]
          %v1084 = vld [vmem:[%s842 + $0x30] sm:$0xf]
          %v1085 = vld [vmem:[%s842 + $0x34] sm:$0xf]
          %v1086 = vld [vmem:[%s842 + $0x38] sm:$0xf]
          %v1087 = vld [vmem:[%s842 + $0x3c] sm:$0xf]
          %v1104 = vunpack.c.l.b16 %v1072
          %v1105 = vunpack.c.l.b16 %v1073
          %v1106 = vunpack.c.l.b16 %v1074
          %v1107 = vunpack.c.l.b16 %v1075
          %v1108 = vunpack.c.l.b16 %v1076
          %v1109 = vunpack.c.l.b16 %v1077
          %v1110 = vunpack.c.l.b16 %v1078
          %v1111 = vunpack.c.l.b16 %v1079
          %v1112 = vunpack.c.l.b16 %v1080
          %v1113 = vunpack.c.l.b16 %v1081
          %v1114 = vunpack.c.l.b16 %v1082
          %v1115 = vunpack.c.l.b16 %v1083
          %v1116 = vunpack.c.l.b16 %v1084
          %v1117 = vunpack.c.l.b16 %v1085
          %v1118 = vunpack.c.l.b16 %v1086
          %v1119 = vunpack.c.l.b16 %v1087
          %v1120 = vpack.c.b16 %v1105, %v1104
          %v1121 = vpack.c.b16 %v1107, %v1106
          %v1122 = vpack.c.b16 %v1109, %v1108
          %v1123 = vpack.c.b16 %v1111, %v1110
          %v1124 = vpack.c.b16 %v1113, %v1112
          %v1125 = vpack.c.b16 %v1115, %v1114
          %v1126 = vpack.c.b16 %v1117, %v1116
          %v1127 = vpack.c.b16 %v1119, %v1118
          %1136 = vmatprep.subr.bf16.mxu0 0
          %1137 = vmatpush1.bf16.msra.mxu0 %v1120
          %1138 = vmatprep.subr.bf16.mxu0 0
          %1139 = vmatpush1.bf16.msra.mxu0 %v1121
          %1140 = vmatprep.subr.bf16.mxu0 0
          %1141 = vmatpush1.bf16.msra.mxu0 %v1122
          %1142 = vmatprep.subr.bf16.mxu0 0
          %1143 = vmatpush1.bf16.msra.mxu0 %v1123
          %1144 = vmatprep.subr.bf16.mxu0 0
          %1145 = vmatpush1.bf16.msra.mxu0 %v1124
          %1146 = vmatprep.subr.bf16.mxu0 0
          %1147 = vmatpush1.bf16.msra.mxu0 %v1125
          %1148 = vmatprep.subr.bf16.mxu0 0
          %1149 = vmatpush1.bf16.msra.mxu0 %v1126
          %1150 = vmatprep.subr.bf16.mxu0 0
          %1151 = vmatpush1.bf16.msra.mxu0 %v1127
          %1152 = vmatprep.subr.bf16.mxu0 0
          %1153 = vmatpush1.bf16.msra.mxu0 0
          %1154 = vmatprep.subr.bf16.mxu0 0
          %1155 = vmatpush1.bf16.msra.mxu0 0
          %1156 = vmatprep.subr.bf16.mxu0 0
          %1157 = vmatpush1.bf16.msra.mxu0 0
          %1158 = vmatprep.subr.bf16.mxu0 0
          %1159 = vmatpush1.bf16.msra.mxu0 0
          %1160 = vmatprep.subr.bf16.mxu0 0
          %1161 = vmatpush1.bf16.msra.mxu0 0
          %1162 = vmatprep.subr.bf16.mxu0 0
          %1163 = vmatpush1.bf16.msra.mxu0 0
          %1164 = vmatprep.subr.bf16.mxu0 0
          %1165 = vmatpush1.bf16.msra.mxu0 0
          %1166 = vmatprep.subr.bf16.mxu0 0
          %1167 = vmatpush1.bf16.msra.mxu0 0
          %1168 = vmatprep.mubr.bf16.mxu0 0
          %1169 = vmatmul.mubr.bf16.gmra.mrb[0].mxu0 %v1071
          %v1170 = vpop.f32.mrb[0].mxu0
          %v1171 = vadd.f32 0.0, %v1170
          %v1172 = vpop.f32.mrb[0].mxu0
          %v1173 = vpop.f32.mrb[0].mxu0
          %v1174 = vadd.f32 0.0, %v1173
          %v1175 = vpop.f32.mrb[0].mxu0
          %1176 = vdwg.mxu0
          %v1177 = vpack.c.bf16 %v1174, %v1171
          %1178 = vst [vmem:[#allocation4] sm:$0xff] %v1177
        $region144: #{tpu_custom_call.1} parent=99 // pred_fallthru
          _
        %v1179 = vld [vmem:[%s966] sm:$0xf]
        %v1180 = vld [vmem:[%s966 + $0x4] sm:$0xf]
        %v1181 = vld [vmem:[%s966 + $0x8] sm:$0xf]
        %v1182 = vld [vmem:[%s966 + $0xc] sm:$0xf]
        %v1183 = vld [vmem:[%s966 + $0x10] sm:$0xf]
        %v1184 = vld [vmem:[%s966 + $0x14] sm:$0xf]
        %v1185 = vld [vmem:[%s966 + $0x18] sm:$0xf]
        %v1186 = vld [vmem:[%s966 + $0x1c] sm:$0xf]
        %v1187 = vld [vmem:[%s966 + $0x20] sm:$0xf]
        %v1188 = vld [vmem:[%s966 + $0x24] sm:$0xf]
        %v1189 = vld [vmem:[%s966 + $0x28] sm:$0xf]
        %v1190 = vld [vmem:[%s966 + $0x2c] sm:$0xf]
        %v1191 = vld [vmem:[%s966 + $0x30] sm:$0xf]
        %v1192 = vld [vmem:[%s966 + $0x34] sm:$0xf]
        %v1193 = vld [vmem:[%s966 + $0x38] sm:$0xf]
        %v1194 = vld [vmem:[%s966 + $0x3c] sm:$0xf]
        %v1195 = vld [vmem:[%s817] sm:$0xf]
        %v1196 = vld [vmem:[%s825] sm:$0x1]
        %v1198 = vlaneseq
        %v1199 = vshrl.u32 %v1198, 7
        %v1200 = vsub.s32 0, %v1199
        %v1201 = vrot.slane %v1196, %v1200
        %v1219 = vunpack.c.l.b16 %v1179
        %v1220 = vunpack.c.l.b16 %v1180
        %v1221 = vunpack.c.l.b16 %v1181
        %v1222 = vunpack.c.l.b16 %v1182
        %v1223 = vunpack.c.l.b16 %v1183
        %v1224 = vunpack.c.l.b16 %v1184
        %v1225 = vunpack.c.l.b16 %v1185
        %v1226 = vunpack.c.l.b16 %v1186
        %v1227 = vunpack.c.l.b16 %v1187
        %v1228 = vunpack.c.l.b16 %v1188
        %v1229 = vunpack.c.l.b16 %v1189
        %v1230 = vunpack.c.l.b16 %v1190
        %v1231 = vunpack.c.l.b16 %v1191
        %v1232 = vunpack.c.l.b16 %v1192
        %v1233 = vunpack.c.l.b16 %v1193
        %v1234 = vunpack.c.l.b16 %v1194
        %v1235 = vpack.c.b16 %v1220, %v1219
        %v1236 = vpack.c.b16 %v1222, %v1221
        %v1237 = vpack.c.b16 %v1224, %v1223
        %v1238 = vpack.c.b16 %v1226, %v1225
        %v1239 = vpack.c.b16 %v1228, %v1227
        %v1240 = vpack.c.b16 %v1230, %v1229
        %v1241 = vpack.c.b16 %v1232, %v1231
        %v1242 = vpack.c.b16 %v1234, %v1233
        %vm1243 = vcmask 64512
        %v1245 = vsel %vm1243, %v1235, 0
        %v1248 = vsel %vm1243, %v1236, 0
        %v1251 = vsel %vm1243, %v1237, 0
        %v1254 = vsel %vm1243, %v1238, 0
        %v1257 = vsel %vm1243, %v1239, 0
        %v1260 = vsel %vm1243, %v1240, 0
        %v1263 = vsel %vm1243, %v1241, 0
        %v1266 = vsel %vm1243, %v1242, 0
        %vm1268 = vcmask 1043456
        %v1270 = vsel %vm1268, %v1195, 0
        %1272 = vmatprep.subr.bf16.mxu0 0
        %1273 = vmatpush1.bf16.msra.mxu0 %v1270
        %1274 = vmatprep.subr.bf16.mxu0 0
        %1275 = vmatpush1.bf16.msra.mxu0 0
        %1276 = vmatprep.subr.bf16.mxu0 0
        %1277 = vmatpush1.bf16.msra.mxu0 0
        %1278 = vmatprep.subr.bf16.mxu0 0
        %1279 = vmatpush1.bf16.msra.mxu0 0
        %1280 = vmatprep.subr.bf16.mxu0 0
        %1281 = vmatpush1.bf16.msra.mxu0 0
        %1282 = vmatprep.subr.bf16.mxu0 0
        %1283 = vmatpush1.bf16.msra.mxu0 0
        %1284 = vmatprep.subr.bf16.mxu0 0
        %1285 = vmatpush1.bf16.msra.mxu0 0
        %1286 = vmatprep.subr.bf16.mxu0 0
        %1287 = vmatpush1.bf16.msra.mxu0 0
        %1288 = vmatprep.subr.bf16.mxu0 0
        %1289 = vmatpush1.bf16.msra.mxu0 0
        %1290 = vmatprep.subr.bf16.mxu0 0
        %1291 = vmatpush1.bf16.msra.mxu0 0
        %1292 = vmatprep.subr.bf16.mxu0 0
        %1293 = vmatpush1.bf16.msra.mxu0 0
        %1294 = vmatprep.subr.bf16.mxu0 0
        %1295 = vmatpush1.bf16.msra.mxu0 0
        %1296 = vmatprep.subr.bf16.mxu0 0
        %1297 = vmatpush1.bf16.msra.mxu0 0
        %1298 = vmatprep.subr.bf16.mxu0 0
        %1299 = vmatpush1.bf16.msra.mxu0 0
        %1300 = vmatprep.subr.bf16.mxu0 0
        %1301 = vmatpush1.bf16.msra.mxu0 0
        %1302 = vmatprep.subr.bf16.mxu0 0
        %1303 = vmatpush1.bf16.msra.mxu0 0
        %1304 = vmatprep.mubr.bf16.mxu0 0
        %1305 = vmatmul.mubr.bf16.gmra.mrb[0].mxu0 %v1245
        %v1306 = vpop.f32.mrb[0].mxu0
        %v1307 = vadd.f32 %v1201, %v1306
        %v1308 = vpop.f32.mrb[0].mxu0
        %v1309 = vpop.f32.mrb[0].mxu0
        %v1310 = vadd.f32 %v1201, %v1309
        %v1311 = vpop.f32.mrb[0].mxu0
        %1312 = vmatprep.mubr.bf16.mxu0 0
        %1313 = vmatmul.mubr.bf16.gmra.mrb[0].mxu0 %v1248
        %v1314 = vpop.f32.mrb[0].mxu0
        %v1315 = vadd.f32 %v1201, %v1314
        %v1316 = vpop.f32.mrb[0].mxu0
        %v1317 = vpop.f32.mrb[0].mxu0
        %v1318 = vadd.f32 %v1201, %v1317
        %v1319 = vpop.f32.mrb[0].mxu0
        %1320 = vmatprep.mubr.bf16.mxu0 0
        %1321 = vmatmul.mubr.bf16.gmra.mrb[0].mxu0 %v1251
        %v1322 = vpop.f32.mrb[0].mxu0
        %v1323 = vadd.f32 %v1201, %v1322
        %v1324 = vpop.f32.mrb[0].mxu0
        %v1325 = vpop.f32.mrb[0].mxu0
        %v1326 = vadd.f32 %v1201, %v1325
        %v1327 = vpop.f32.mrb[0].mxu0
        %1328 = vmatprep.mubr.bf16.mxu0 0
        %1329 = vmatmul.mubr.bf16.gmra.mrb[0].mxu0 %v1254
        %v1330 = vpop.f32.mrb[0].mxu0
        %v1331 = vadd.f32 %v1201, %v1330
        %v1332 = vpop.f32.mrb[0].mxu0
        %v1333 = vpop.f32.mrb[0].mxu0
        %v1334 = vadd.f32 %v1201, %v1333
        %v1335 = vpop.f32.mrb[0].mxu0
        %1336 = vmatprep.mubr.bf16.mxu0 0
        %1337 = vmatmul.mubr.bf16.gmra.mrb[0].mxu0 %v1257
        %v1338 = vpop.f32.mrb[0].mxu0
        %v1339 = vadd.f32 %v1201, %v1338
        %v1340 = vpop.f32.mrb[0].mxu0
        %v1341 = vpop.f32.mrb[0].mxu0
        %v1342 = vadd.f32 %v1201, %v1341
        %v1343 = vpop.f32.mrb[0].mxu0
        %1344 = vmatprep.mubr.bf16.mxu0 0
        %1345 = vmatmul.mubr.bf16.gmra.mrb[0].mxu0 %v1260
        %v1346 = vpop.f32.mrb[0].mxu0
        %v1347 = vadd.f32 %v1201, %v1346
        %v1348 = vpop.f32.mrb[0].mxu0
        %v1349 = vpop.f32.mrb[0].mxu0
        %v1350 = vadd.f32 %v1201, %v1349
        %v1351 = vpop.f32.mrb[0].mxu0
        %1352 = vmatprep.mubr.bf16.mxu0 0
        %1353 = vmatmul.mubr.bf16.gmra.mrb[0].mxu0 %v1263
        %v1354 = vpop.f32.mrb[0].mxu0
        %v1355 = vadd.f32 %v1201, %v1354
        %v1356 = vpop.f32.mrb[0].mxu0
        %v1357 = vpop.f32.mrb[0].mxu0
        %v1358 = vadd.f32 %v1201, %v1357
        %v1359 = vpop.f32.mrb[0].mxu0
        %1360 = vmatprep.mubr.bf16.mxu0 0
        %1361 = vmatmul.mubr.bf16.gmra.mrb[0].mxu0 %v1266
        %v1362 = vpop.f32.mrb[0].mxu0
        %v1363 = vadd.f32 %v1201, %v1362
        %v1364 = vpop.f32.mrb[0].mxu0
        %v1365 = vpop.f32.mrb[0].mxu0
        %v1366 = vadd.f32 %v1201, %v1365
        %v1367 = vpop.f32.mrb[0].mxu0
        %1368 = vdwg.mxu0
        %v1369 = vmax.f32 %v1307, 0.0
        %v1370 = vmax.f32 %v1310, 0.0
        %v1371 = vmax.f32 %v1315, 0.0
        %v1372 = vmax.f32 %v1318, 0.0
        %v1373 = vmax.f32 %v1323, 0.0
        %v1374 = vmax.f32 %v1326, 0.0
        %v1375 = vmax.f32 %v1331, 0.0
        %v1376 = vmax.f32 %v1334, 0.0
        %v1377 = vmax.f32 %v1339, 0.0
        %v1378 = vmax.f32 %v1342, 0.0
        %v1379 = vmax.f32 %v1347, 0.0
        %v1380 = vmax.f32 %v1350, 0.0
        %v1381 = vmax.f32 %v1355, 0.0
        %v1382 = vmax.f32 %v1358, 0.0
        %v1383 = vmax.f32 %v1363, 0.0
        %v1384 = vmax.f32 %v1366, 0.0
        %v1385 = vand.u32 2147483647, %v1307
        %v1386 = vand.u32 2147483647, %v1310
        %v1387 = vand.u32 2147483647, %v1315
        %v1388 = vand.u32 2147483647, %v1318
        %v1389 = vand.u32 2147483647, %v1323
        %v1390 = vand.u32 2147483647, %v1326
        %v1391 = vand.u32 2147483647, %v1331
        %v1392 = vand.u32 2147483647, %v1334
        %v1393 = vand.u32 2147483647, %v1339
        %v1394 = vand.u32 2147483647, %v1342
        %v1395 = vand.u32 2147483647, %v1347
        %v1396 = vand.u32 2147483647, %v1350
        %v1397 = vand.u32 2147483647, %v1355
        %v1398 = vand.u32 2147483647, %v1358
        %v1399 = vand.u32 2147483647, %v1363
        %v1400 = vand.u32 2147483647, %v1366
        %v1401 = vsub.f32 0.0, %v1385
        %v1402 = vsub.f32 0.0, %v1386
        %v1403 = vsub.f32 0.0, %v1387
        %v1404 = vsub.f32 0.0, %v1388
        %v1405 = vsub.f32 0.0, %v1389
        %v1406 = vsub.f32 0.0, %v1390
        %v1407 = vsub.f32 0.0, %v1391
        %v1408 = vsub.f32 0.0, %v1392
        %v1409 = vsub.f32 0.0, %v1393
        %v1410 = vsub.f32 0.0, %v1394
        %v1411 = vsub.f32 0.0, %v1395
        %v1412 = vsub.f32 0.0, %v1396
        %v1413 = vsub.f32 0.0, %v1397
        %v1414 = vsub.f32 0.0, %v1398
        %v1415 = vsub.f32 0.0, %v1399
        %v1416 = vsub.f32 0.0, %v1400
        %v1417 = vmul.f32 %v1401, 1.442695
        %v1418 = vpow.pop %v1417
        %v1419 = vmul.f32 %v1402, 1.442695
        %v1420 = vpow.pop %v1419
        %v1421 = vmul.f32 %v1403, 1.442695
        %v1422 = vpow.pop %v1421
        %v1423 = vmul.f32 %v1404, 1.442695
        %v1424 = vpow.pop %v1423
        %v1425 = vmul.f32 %v1405, 1.442695
        %v1426 = vpow.pop %v1425
        %v1427 = vmul.f32 %v1406, 1.442695
        %v1428 = vpow.pop %v1427
        %v1429 = vmul.f32 %v1407, 1.442695
        %v1430 = vpow.pop %v1429
        %v1431 = vmul.f32 %v1408, 1.442695
        %v1432 = vpow.pop %v1431
        %v1433 = vmul.f32 %v1409, 1.442695
        %v1434 = vpow.pop %v1433
        %v1435 = vmul.f32 %v1410, 1.442695
        %v1436 = vpow.pop %v1435
        %v1437 = vmul.f32 %v1411, 1.442695
        %v1438 = vpow.pop %v1437
        %v1439 = vmul.f32 %v1412, 1.442695
        %v1440 = vpow.pop %v1439
        %v1441 = vmul.f32 %v1413, 1.442695
        %v1442 = vpow.pop %v1441
        %v1443 = vmul.f32 %v1414, 1.442695
        %v1444 = vpow.pop %v1443
        %v1445 = vmul.f32 %v1415, 1.442695
        %v1446 = vpow.pop %v1445
        %v1447 = vmul.f32 %v1416, 1.442695
        %v1448 = vpow.pop %v1447
        %v1449 = vadd.f32 %v1418, 1.0
        %v1450 = vlog2.pop %v1449
        %v1451 = vmul.f32 %v1450, 0.6931472
        %v1452 = vmul.f32 -0.5, %v1418
        %v1453 = vadd.f32 %v1452, 1.0
        %v1454 = vmul.f32 %v1453, %v1418
        %v1455 = vand.u32 2147483647, %v1418
        %vm1456 = vcmp.lt.f32.partialorder %v1455, 0.0004427343
        %v1457 = vsel %vm1456, %v1454, %v1451
        %v1458 = vadd.f32 %v1420, 1.0
        %v1459 = vlog2.pop %v1458
        %v1460 = vmul.f32 %v1459, 0.6931472
        %v1461 = vmul.f32 -0.5, %v1420
        %v1462 = vadd.f32 %v1461, 1.0
        %v1463 = vmul.f32 %v1462, %v1420
        %v1464 = vand.u32 2147483647, %v1420
        %vm1465 = vcmp.lt.f32.partialorder %v1464, 0.0004427343
        %v1466 = vsel %vm1465, %v1463, %v1460
        %v1467 = vadd.f32 %v1422, 1.0
        %v1468 = vlog2.pop %v1467
        %v1469 = vmul.f32 %v1468, 0.6931472
        %v1470 = vmul.f32 -0.5, %v1422
        %v1471 = vadd.f32 %v1470, 1.0
        %v1472 = vmul.f32 %v1471, %v1422
        %v1473 = vand.u32 2147483647, %v1422
        %vm1474 = vcmp.lt.f32.partialorder %v1473, 0.0004427343
        %v1475 = vsel %vm1474, %v1472, %v1469
        %v1476 = vadd.f32 %v1424, 1.0
        %v1477 = vlog2.pop %v1476
        %v1478 = vmul.f32 %v1477, 0.6931472
        %v1479 = vmul.f32 -0.5, %v1424
        %v1480 = vadd.f32 %v1479, 1.0
        %v1481 = vmul.f32 %v1480, %v1424
        %v1482 = vand.u32 2147483647, %v1424
        %vm1483 = vcmp.lt.f32.partialorder %v1482, 0.0004427343
        %v1484 = vsel %vm1483, %v1481, %v1478
        %v1485 = vadd.f32 %v1426, 1.0
        %v1486 = vlog2.pop %v1485
        %v1487 = vmul.f32 %v1486, 0.6931472
        %v1488 = vmul.f32 -0.5, %v1426
        %v1489 = vadd.f32 %v1488, 1.0
        %v1490 = vmul.f32 %v1489, %v1426
        %v1491 = vand.u32 2147483647, %v1426
        %vm1492 = vcmp.lt.f32.partialorder %v1491, 0.0004427343
        %v1493 = vsel %vm1492, %v1490, %v1487
        %v1494 = vadd.f32 %v1428, 1.0
        %v1495 = vlog2.pop %v1494
        %v1496 = vmul.f32 %v1495, 0.6931472
        %v1497 = vmul.f32 -0.5, %v1428
        %v1498 = vadd.f32 %v1497, 1.0
        %v1499 = vmul.f32 %v1498, %v1428
        %v1500 = vand.u32 2147483647, %v1428
        %vm1501 = vcmp.lt.f32.partialorder %v1500, 0.0004427343
        %v1502 = vsel %vm1501, %v1499, %v1496
        %v1503 = vadd.f32 %v1430, 1.0
        %v1504 = vlog2.pop %v1503
        %v1505 = vmul.f32 %v1504, 0.6931472
        %v1506 = vmul.f32 -0.5, %v1430
        %v1507 = vadd.f32 %v1506, 1.0
        %v1508 = vmul.f32 %v1507, %v1430
        %v1509 = vand.u32 2147483647, %v1430
        %vm1510 = vcmp.lt.f32.partialorder %v1509, 0.0004427343
        %v1511 = vsel %vm1510, %v1508, %v1505
        %v1512 = vadd.f32 %v1432, 1.0
        %v1513 = vlog2.pop %v1512
        %v1514 = vmul.f32 %v1513, 0.6931472
        %v1515 = vmul.f32 -0.5, %v1432
        %v1516 = vadd.f32 %v1515, 1.0
        %v1517 = vmul.f32 %v1516, %v1432
        %v1518 = vand.u32 2147483647, %v1432
        %vm1519 = vcmp.lt.f32.partialorder %v1518, 0.0004427343
        %v1520 = vsel %vm1519, %v1517, %v1514
        %v1521 = vadd.f32 %v1434, 1.0
        %v1522 = vlog2.pop %v1521
        %v1523 = vmul.f32 %v1522, 0.6931472
        %v1524 = vmul.f32 -0.5, %v1434
        %v1525 = vadd.f32 %v1524, 1.0
        %v1526 = vmul.f32 %v1525, %v1434
        %v1527 = vand.u32 2147483647, %v1434
        %vm1528 = vcmp.lt.f32.partialorder %v1527, 0.0004427343
        %v1529 = vsel %vm1528, %v1526, %v1523
        %v1530 = vadd.f32 %v1436, 1.0
        %v1531 = vlog2.pop %v1530
        %v1532 = vmul.f32 %v1531, 0.6931472
        %v1533 = vmul.f32 -0.5, %v1436
        %v1534 = vadd.f32 %v1533, 1.0
        %v1535 = vmul.f32 %v1534, %v1436
        %v1536 = vand.u32 2147483647, %v1436
        %vm1537 = vcmp.lt.f32.partialorder %v1536, 0.0004427343
        %v1538 = vsel %vm1537, %v1535, %v1532
        %v1539 = vadd.f32 %v1438, 1.0
        %v1540 = vlog2.pop %v1539
        %v1541 = vmul.f32 %v1540, 0.6931472
        %v1542 = vmul.f32 -0.5, %v1438
        %v1543 = vadd.f32 %v1542, 1.0
        %v1544 = vmul.f32 %v1543, %v1438
        %v1545 = vand.u32 2147483647, %v1438
        %vm1546 = vcmp.lt.f32.partialorder %v1545, 0.0004427343
        %v1547 = vsel %vm1546, %v1544, %v1541
        %v1548 = vadd.f32 %v1440, 1.0
        %v1549 = vlog2.pop %v1548
        %v1550 = vmul.f32 %v1549, 0.6931472
        %v1551 = vmul.f32 -0.5, %v1440
        %v1552 = vadd.f32 %v1551, 1.0
        %v1553 = vmul.f32 %v1552, %v1440
        %v1554 = vand.u32 2147483647, %v1440
        %vm1555 = vcmp.lt.f32.partialorder %v1554, 0.0004427343
        %v1556 = vsel %vm1555, %v1553, %v1550
        %v1557 = vadd.f32 %v1442, 1.0
        %v1558 = vlog2.pop %v1557
        %v1559 = vmul.f32 %v1558, 0.6931472
        %v1560 = vmul.f32 -0.5, %v1442
        %v1561 = vadd.f32 %v1560, 1.0
        %v1562 = vmul.f32 %v1561, %v1442
        %v1563 = vand.u32 2147483647, %v1442
        %vm1564 = vcmp.lt.f32.partialorder %v1563, 0.0004427343
        %v1565 = vsel %vm1564, %v1562, %v1559
        %v1566 = vadd.f32 %v1444, 1.0
        %v1567 = vlog2.pop %v1566
        %v1568 = vmul.f32 %v1567, 0.6931472
        %v1569 = vmul.f32 -0.5, %v1444
        %v1570 = vadd.f32 %v1569, 1.0
        %v1571 = vmul.f32 %v1570, %v1444
        %v1572 = vand.u32 2147483647, %v1444
        %vm1573 = vcmp.lt.f32.partialorder %v1572, 0.0004427343
        %v1574 = vsel %vm1573, %v1571, %v1568
        %v1575 = vadd.f32 %v1446, 1.0
        %v1576 = vlog2.pop %v1575
        %v1577 = vmul.f32 %v1576, 0.6931472
        %v1578 = vmul.f32 -0.5, %v1446
        %v1579 = vadd.f32 %v1578, 1.0
        %v1580 = vmul.f32 %v1579, %v1446
        %v1581 = vand.u32 2147483647, %v1446
        %vm1582 = vcmp.lt.f32.partialorder %v1581, 0.0004427343
        %v1583 = vsel %vm1582, %v1580, %v1577
        %v1584 = vadd.f32 %v1448, 1.0
        %v1585 = vlog2.pop %v1584
        %v1586 = vmul.f32 %v1585, 0.6931472
        %v1587 = vmul.f32 -0.5, %v1448
        %v1588 = vadd.f32 %v1587, 1.0
        %v1589 = vmul.f32 %v1588, %v1448
        %v1590 = vand.u32 2147483647, %v1448
        %vm1591 = vcmp.lt.f32.partialorder %v1590, 0.0004427343
        %v1592 = vsel %vm1591, %v1589, %v1586
        %v1593 = vadd.f32 %v1369, %v1457
        %v1594 = vadd.f32 %v1370, %v1466
        %v1595 = vadd.f32 %v1371, %v1475
        %v1596 = vadd.f32 %v1372, %v1484
        %v1597 = vadd.f32 %v1373, %v1493
        %v1598 = vadd.f32 %v1374, %v1502
        %v1599 = vadd.f32 %v1375, %v1511
        %v1600 = vadd.f32 %v1376, %v1520
        %v1601 = vadd.f32 %v1377, %v1529
        %v1602 = vadd.f32 %v1378, %v1538
        %v1603 = vadd.f32 %v1379, %v1547
        %v1604 = vadd.f32 %v1380, %v1556
        %v1605 = vadd.f32 %v1381, %v1565
        %v1606 = vadd.f32 %v1382, %v1574
        %v1607 = vadd.f32 %v1383, %v1583
        %v1608 = vadd.f32 %v1384, %v1592
        %v1609 = vsub.f32 %v1593, 0.6931472
        %v1610 = vsub.f32 %v1594, 0.6931472
        %v1611 = vsub.f32 %v1595, 0.6931472
        %v1612 = vsub.f32 %v1596, 0.6931472
        %v1613 = vsub.f32 %v1597, 0.6931472
        %v1614 = vsub.f32 %v1598, 0.6931472
        %v1615 = vsub.f32 %v1599, 0.6931472
        %v1616 = vsub.f32 %v1600, 0.6931472
        %v1617 = vsub.f32 %v1601, 0.6931472
        %v1618 = vsub.f32 %v1602, 0.6931472
        %v1619 = vsub.f32 %v1603, 0.6931472
        %v1620 = vsub.f32 %v1604, 0.6931472
        %v1621 = vsub.f32 %v1605, 0.6931472
        %v1622 = vsub.f32 %v1606, 0.6931472
        %v1623 = vsub.f32 %v1607, 0.6931472
        %v1624 = vsub.f32 %v1608, 0.6931472
        %v1625 = vpack.c.bf16 %v1610, %v1609
        %v1626 = vpack.c.bf16 %v1612, %v1611
        %v1627 = vpack.c.bf16 %v1614, %v1613
        %v1628 = vpack.c.bf16 %v1616, %v1615
        %v1629 = vpack.c.bf16 %v1618, %v1617
        %v1630 = vpack.c.bf16 %v1620, %v1619
        %v1631 = vpack.c.bf16 %v1622, %v1621
        %v1632 = vpack.c.bf16 %v1624, %v1623
        %v1633 = vld [vmem:[%s978] sm:$0xf]
        %v1634 = vld [vmem:[%s978 + $0x4] sm:$0xf]
        %v1635 = vld [vmem:[%s978 + $0x8] sm:$0xf]
        %v1636 = vld [vmem:[%s978 + $0xc] sm:$0xf]
        %v1637 = vld [vmem:[%s978 + $0x10] sm:$0xf]
        %v1638 = vld [vmem:[%s978 + $0x14] sm:$0xf]
        %v1639 = vld [vmem:[%s978 + $0x18] sm:$0xf]
        %v1640 = vld [vmem:[%s978 + $0x1c] sm:$0xf]
        %v1641 = vld [vmem:[%s978 + $0x20] sm:$0xf]
        %v1642 = vld [vmem:[%s978 + $0x24] sm:$0xf]
        %v1643 = vld [vmem:[%s978 + $0x28] sm:$0xf]
        %v1644 = vld [vmem:[%s978 + $0x2c] sm:$0xf]
        %v1645 = vld [vmem:[%s978 + $0x30] sm:$0xf]
        %v1646 = vld [vmem:[%s978 + $0x34] sm:$0xf]
        %v1647 = vld [vmem:[%s978 + $0x38] sm:$0xf]
        %v1648 = vld [vmem:[%s978 + $0x3c] sm:$0xf]
        %v1649 = vld [vmem:[%s833] sm:$0x1]
        %v1651 = vlaneseq
        %v1652 = vshrl.u32 %v1651, 7
        %v1653 = vsub.s32 0, %v1652
        %v1654 = vrot.slane %v1649, %v1653
        %v1672 = vunpack.c.l.b16 %v1633
        %v1673 = vunpack.c.l.b16 %v1634
        %v1674 = vunpack.c.l.b16 %v1635
        %v1675 = vunpack.c.l.b16 %v1636
        %v1676 = vunpack.c.l.b16 %v1637
        %v1677 = vunpack.c.l.b16 %v1638
        %v1678 = vunpack.c.l.b16 %v1639
        %v1679 = vunpack.c.l.b16 %v1640
        %v1680 = vunpack.c.l.b16 %v1641
        %v1681 = vunpack.c.l.b16 %v1642
        %v1682 = vunpack.c.l.b16 %v1643
        %v1683 = vunpack.c.l.b16 %v1644
        %v1684 = vunpack.c.l.b16 %v1645
        %v1685 = vunpack.c.l.b16 %v1646
        %v1686 = vunpack.c.l.b16 %v1647
        %v1687 = vunpack.c.l.b16 %v1648
        %v1688 = vpack.c.b16 %v1673, %v1672
        %v1689 = vpack.c.b16 %v1675, %v1674
        %v1690 = vpack.c.b16 %v1677, %v1676
        %v1691 = vpack.c.b16 %v1679, %v1678
        %v1692 = vpack.c.b16 %v1681, %v1680
        %v1693 = vpack.c.b16 %v1683, %v1682
        %v1694 = vpack.c.b16 %v1685, %v1684
        %v1695 = vpack.c.b16 %v1687, %v1686
        %1704 = vmatprep.subr.bf16.mxu0 0
        %1705 = vmatpush1.bf16.msra.mxu0 %v1688
        %1706 = vmatprep.subr.bf16.mxu0 0
        %1707 = vmatpush1.bf16.msra.mxu0 %v1689
        %1708 = vmatprep.subr.bf16.mxu0 0
        %1709 = vmatpush1.bf16.msra.mxu0 %v1690
        %1710 = vmatprep.subr.bf16.mxu0 0
        %1711 = vmatpush1.bf16.msra.mxu0 %v1691
        %1712 = vmatprep.subr.bf16.mxu0 0
        %1713 = vmatpush1.bf16.msra.mxu0 %v1692
        %1714 = vmatprep.subr.bf16.mxu0 0
        %1715 = vmatpush1.bf16.msra.mxu0 %v1693
        %1716 = vmatprep.subr.bf16.mxu0 0
        %1717 = vmatpush1.bf16.msra.mxu0 %v1694
        %1718 = vmatprep.subr.bf16.mxu0 0
        %1719 = vmatpush1.bf16.msra.mxu0 %v1695
        %1720 = vmatprep.subr.bf16.mxu0 0
        %1721 = vmatpush1.bf16.msra.mxu0 0
        %1722 = vmatprep.subr.bf16.mxu0 0
        %1723 = vmatpush1.bf16.msra.mxu0 0
        %1724 = vmatprep.subr.bf16.mxu0 0
        %1725 = vmatpush1.bf16.msra.mxu0 0
        %1726 = vmatprep.subr.bf16.mxu0 0
        %1727 = vmatpush1.bf16.msra.mxu0 0
        %1728 = vmatprep.subr.bf16.mxu0 0
        %1729 = vmatpush1.bf16.msra.mxu0 0
        %1730 = vmatprep.subr.bf16.mxu0 0
        %1731 = vmatpush1.bf16.msra.mxu0 0
        %1732 = vmatprep.subr.bf16.mxu0 0
        %1733 = vmatpush1.bf16.msra.mxu0 0
        %1734 = vmatprep.subr.bf16.mxu0 0
        %1735 = vmatpush1.bf16.msra.mxu0 0
        %1736 = vmatprep.mubr.bf16.mxu0 0
        %1737 = vmatmul.mubr.bf16.gmra.mrb[0].mxu0 %v1625
        %v1738 = vpop.f32.mrb[0].mxu0
        %v1739 = vadd.f32 %v1654, %v1738
        %v1740 = vpop.f32.mrb[0].mxu0
        %v1741 = vpop.f32.mrb[0].mxu0
        %v1742 = vadd.f32 %v1654, %v1741
        %v1743 = vpop.f32.mrb[0].mxu0
        %1744 = vmatprep.mubr.bf16.mxu0 0
        %1745 = vmatmul.mubr.bf16.gmra.mrb[0].mxu0 %v1626
        %v1746 = vpop.f32.mrb[0].mxu0
        %v1747 = vadd.f32 %v1654, %v1746
        %v1748 = vpop.f32.mrb[0].mxu0
        %v1749 = vpop.f32.mrb[0].mxu0
        %v1750 = vadd.f32 %v1654, %v1749
        %v1751 = vpop.f32.mrb[0].mxu0
        %1752 = vmatprep.mubr.bf16.mxu0 0
        %1753 = vmatmul.mubr.bf16.gmra.mrb[0].mxu0 %v1627
        %v1754 = vpop.f32.mrb[0].mxu0
        %v1755 = vadd.f32 %v1654, %v1754
        %v1756 = vpop.f32.mrb[0].mxu0
        %v1757 = vpop.f32.mrb[0].mxu0
        %v1758 = vadd.f32 %v1654, %v1757
        %v1759 = vpop.f32.mrb[0].mxu0
        %1760 = vmatprep.mubr.bf16.mxu0 0
        %1761 = vmatmul.mubr.bf16.gmra.mrb[0].mxu0 %v1628
        %v1762 = vpop.f32.mrb[0].mxu0
        %v1763 = vadd.f32 %v1654, %v1762
        %v1764 = vpop.f32.mrb[0].mxu0
        %v1765 = vpop.f32.mrb[0].mxu0
        %v1766 = vadd.f32 %v1654, %v1765
        %v1767 = vpop.f32.mrb[0].mxu0
        %1768 = vmatprep.mubr.bf16.mxu0 0
        %1769 = vmatmul.mubr.bf16.gmra.mrb[0].mxu0 %v1629
        %v1770 = vpop.f32.mrb[0].mxu0
        %v1771 = vadd.f32 %v1654, %v1770
        %v1772 = vpop.f32.mrb[0].mxu0
        %v1773 = vpop.f32.mrb[0].mxu0
        %v1774 = vadd.f32 %v1654, %v1773
        %v1775 = vpop.f32.mrb[0].mxu0
        %1776 = vmatprep.mubr.bf16.mxu0 0
        %1777 = vmatmul.mubr.bf16.gmra.mrb[0].mxu0 %v1630
        %v1778 = vpop.f32.mrb[0].mxu0
        %v1779 = vadd.f32 %v1654, %v1778
        %v1780 = vpop.f32.mrb[0].mxu0
        %v1781 = vpop.f32.mrb[0].mxu0
        %v1782 = vadd.f32 %v1654, %v1781
        %v1783 = vpop.f32.mrb[0].mxu0
        %1784 = vmatprep.mubr.bf16.mxu0 0
        %1785 = vmatmul.mubr.bf16.gmra.mrb[0].mxu0 %v1631
        %v1786 = vpop.f32.mrb[0].mxu0
        %v1787 = vadd.f32 %v1654, %v1786
        %v1788 = vpop.f32.mrb[0].mxu0
        %v1789 = vpop.f32.mrb[0].mxu0
        %v1790 = vadd.f32 %v1654, %v1789
        %v1791 = vpop.f32.mrb[0].mxu0
        %1792 = vmatprep.mubr.bf16.mxu0 0
        %1793 = vmatmul.mubr.bf16.gmra.mrb[0].mxu0 %v1632
        %v1794 = vpop.f32.mrb[0].mxu0
        %v1795 = vadd.f32 %v1654, %v1794
        %v1796 = vpop.f32.mrb[0].mxu0
        %v1797 = vpop.f32.mrb[0].mxu0
        %v1798 = vadd.f32 %v1654, %v1797
        %v1799 = vpop.f32.mrb[0].mxu0
        %1800 = vdwg.mxu0
        %v1801 = vld [vmem:[%s972] sm:$0xf]
        %v1802 = vld [vmem:[%s972 + $0x4] sm:$0xf]
        %v1803 = vld [vmem:[%s972 + $0x8] sm:$0xf]
        %v1804 = vld [vmem:[%s972 + $0xc] sm:$0xf]
        %v1805 = vld [vmem:[%s972 + $0x10] sm:$0xf]
        %v1806 = vld [vmem:[%s972 + $0x14] sm:$0xf]
        %v1807 = vld [vmem:[%s972 + $0x18] sm:$0xf]
        %v1808 = vld [vmem:[%s972 + $0x1c] sm:$0xf]
        %v1809 = vld [vmem:[%s972 + $0x20] sm:$0xf]
        %v1810 = vld [vmem:[%s972 + $0x24] sm:$0xf]
        %v1811 = vld [vmem:[%s972 + $0x28] sm:$0xf]
        %v1812 = vld [vmem:[%s972 + $0x2c] sm:$0xf]
        %v1813 = vld [vmem:[%s972 + $0x30] sm:$0xf]
        %v1814 = vld [vmem:[%s972 + $0x34] sm:$0xf]
        %v1815 = vld [vmem:[%s972 + $0x38] sm:$0xf]
        %v1816 = vld [vmem:[%s972 + $0x3c] sm:$0xf]
        %v1817 = vld [vmem:[#allocation4] sm:$0xff]
        %v1834 = vunpack.c.l.b16 %v1801
        %v1835 = vunpack.c.l.b16 %v1802
        %v1836 = vunpack.c.l.b16 %v1803
        %v1837 = vunpack.c.l.b16 %v1804
        %v1838 = vunpack.c.l.b16 %v1805
        %v1839 = vunpack.c.l.b16 %v1806
        %v1840 = vunpack.c.l.b16 %v1807
        %v1841 = vunpack.c.l.b16 %v1808
        %v1842 = vunpack.c.l.b16 %v1809
        %v1843 = vunpack.c.l.b16 %v1810
        %v1844 = vunpack.c.l.b16 %v1811
        %v1845 = vunpack.c.l.b16 %v1812
        %v1846 = vunpack.c.l.b16 %v1813
        %v1847 = vunpack.c.l.b16 %v1814
        %v1848 = vunpack.c.l.b16 %v1815
        %v1849 = vunpack.c.l.b16 %v1816
        %v1850 = vpack.c.b16 %v1835, %v1834
        %v1851 = vpack.c.b16 %v1837, %v1836
        %v1852 = vpack.c.b16 %v1839, %v1838
        %v1853 = vpack.c.b16 %v1841, %v1840
        %v1854 = vpack.c.b16 %v1843, %v1842
        %v1855 = vpack.c.b16 %v1845, %v1844
        %v1856 = vpack.c.b16 %v1847, %v1846
        %v1857 = vpack.c.b16 %v1849, %v1848
        %vm1858 = vcmask 130048
        %v1860 = vsel %vm1858, %v1850, 0
        %v1863 = vsel %vm1858, %v1851, 0
        %v1866 = vsel %vm1858, %v1852, 0
        %v1869 = vsel %vm1858, %v1853, 0
        %v1872 = vsel %vm1858, %v1854, 0
        %v1875 = vsel %vm1858, %v1855, 0
        %v1878 = vsel %vm1858, %v1856, 0
        %v1881 = vsel %vm1858, %v1857, 0
        %1883 = vmatprep.subr.bf16.mxu0 0
        %1884 = vmatpush1.bf16.msra.mxu0 %v1817
        %1885 = vmatprep.subr.bf16.mxu0 0
        %1886 = vmatpush1.bf16.msra.mxu0 0
        %1887 = vmatprep.subr.bf16.mxu0 0
        %1888 = vmatpush1.bf16.msra.mxu0 0
        %1889 = vmatprep.subr.bf16.mxu0 0
        %1890 = vmatpush1.bf16.msra.mxu0 0
        %1891 = vmatprep.subr.bf16.mxu0 0
        %1892 = vmatpush1.bf16.msra.mxu0 0
        %1893 = vmatprep.subr.bf16.mxu0 0
        %1894 = vmatpush1.bf16.msra.mxu0 0
        %1895 = vmatprep.subr.bf16.mxu0 0
        %1896 = vmatpush1.bf16.msra.mxu0 0
        %1897 = vmatprep.subr.bf16.mxu0 0
        %1898 = vmatpush1.bf16.msra.mxu0 0
        %1899 = vmatprep.subr.bf16.mxu0 0
        %1900 = vmatpush1.bf16.msra.mxu0 0
        %1901 = vmatprep.subr.bf16.mxu0 0
        %1902 = vmatpush1.bf16.msra.mxu0 0
        %1903 = vmatprep.subr.bf16.mxu0 0
        %1904 = vmatpush1.bf16.msra.mxu0 0
        %1905 = vmatprep.subr.bf16.mxu0 0
        %1906 = vmatpush1.bf16.msra.mxu0 0
        %1907 = vmatprep.subr.bf16.mxu0 0
        %1908 = vmatpush1.bf16.msra.mxu0 0
        %1909 = vmatprep.subr.bf16.mxu0 0
        %1910 = vmatpush1.bf16.msra.mxu0 0
        %1911 = vmatprep.subr.bf16.mxu0 0
        %1912 = vmatpush1.bf16.msra.mxu0 0
        %1913 = vmatprep.subr.bf16.mxu0 0
        %1914 = vmatpush1.bf16.msra.mxu0 0
        %1915 = vmatprep.mubr.bf16.mxu0 0
        %1916 = vmatmul.mubr.bf16.gmra.mrb[0].mxu0 %v1860
        %v1917 = vpop.f32.mrb[0].mxu0
        %v1918 = vadd.f32 0.0, %v1917
        %v1919 = vpop.f32.mrb[0].mxu0
        %v1920 = vpop.f32.mrb[0].mxu0
        %v1921 = vadd.f32 0.0, %v1920
        %v1922 = vpop.f32.mrb[0].mxu0
        %1923 = vmatprep.mubr.bf16.mxu0 0
        %1924 = vmatmul.mubr.bf16.gmra.mrb[0].mxu0 %v1863
        %v1925 = vpop.f32.mrb[0].mxu0
        %v1926 = vadd.f32 0.0, %v1925
        %v1927 = vpop.f32.mrb[0].mxu0
        %v1928 = vpop.f32.mrb[0].mxu0
        %v1929 = vadd.f32 0.0, %v1928
        %v1930 = vpop.f32.mrb[0].mxu0
        %1931 = vmatprep.mubr.bf16.mxu0 0
        %1932 = vmatmul.mubr.bf16.gmra.mrb[0].mxu0 %v1866
        %v1933 = vpop.f32.mrb[0].mxu0
        %v1934 = vadd.f32 0.0, %v1933
        %v1935 = vpop.f32.mrb[0].mxu0
        %v1936 = vpop.f32.mrb[0].mxu0
        %v1937 = vadd.f32 0.0, %v1936
        %v1938 = vpop.f32.mrb[0].mxu0
        %1939 = vmatprep.mubr.bf16.mxu0 0
        %1940 = vmatmul.mubr.bf16.gmra.mrb[0].mxu0 %v1869
        %v1941 = vpop.f32.mrb[0].mxu0
        %v1942 = vadd.f32 0.0, %v1941
        %v1943 = vpop.f32.mrb[0].mxu0
        %v1944 = vpop.f32.mrb[0].mxu0
        %v1945 = vadd.f32 0.0, %v1944
        %v1946 = vpop.f32.mrb[0].mxu0
        %1947 = vmatprep.mubr.bf16.mxu0 0
        %1948 = vmatmul.mubr.bf16.gmra.mrb[0].mxu0 %v1872
        %v1949 = vpop.f32.mrb[0].mxu0
        %v1950 = vadd.f32 0.0, %v1949
        %v1951 = vpop.f32.mrb[0].mxu0
        %v1952 = vpop.f32.mrb[0].mxu0
        %v1953 = vadd.f32 0.0, %v1952
        %v1954 = vpop.f32.mrb[0].mxu0
        %1955 = vmatprep.mubr.bf16.mxu0 0
        %1956 = vmatmul.mubr.bf16.gmra.mrb[0].mxu0 %v1875
        %v1957 = vpop.f32.mrb[0].mxu0
        %v1958 = vadd.f32 0.0, %v1957
        %v1959 = vpop.f32.mrb[0].mxu0
        %v1960 = vpop.f32.mrb[0].mxu0
        %v1961 = vadd.f32 0.0, %v1960
        %v1962 = vpop.f32.mrb[0].mxu0
        %1963 = vmatprep.mubr.bf16.mxu0 0
        %1964 = vmatmul.mubr.bf16.gmra.mrb[0].mxu0 %v1878
        %v1965 = vpop.f32.mrb[0].mxu0
        %v1966 = vadd.f32 0.0, %v1965
        %v1967 = vpop.f32.mrb[0].mxu0
        %v1968 = vpop.f32.mrb[0].mxu0
        %v1969 = vadd.f32 0.0, %v1968
        %v1970 = vpop.f32.mrb[0].mxu0
        %1971 = vmatprep.mubr.bf16.mxu0 0
        %1972 = vmatmul.mubr.bf16.gmra.mrb[0].mxu0 %v1881
        %v1973 = vpop.f32.mrb[0].mxu0
        %v1974 = vadd.f32 0.0, %v1973
        %v1975 = vpop.f32.mrb[0].mxu0
        %v1976 = vpop.f32.mrb[0].mxu0
        %v1977 = vadd.f32 0.0, %v1976
        %v1978 = vpop.f32.mrb[0].mxu0
        %1979 = vdwg.mxu0
        %v1980 = vmul.f32 %v1918, %v1739
        %v1981 = vmul.f32 %v1921, %v1742
        %v1982 = vmul.f32 %v1926, %v1747
        %v1983 = vmul.f32 %v1929, %v1750
        %v1984 = vmul.f32 %v1934, %v1755
        %v1985 = vmul.f32 %v1937, %v1758
        %v1986 = vmul.f32 %v1942, %v1763
        %v1987 = vmul.f32 %v1945, %v1766
        %v1988 = vmul.f32 %v1950, %v1771
        %v1989 = vmul.f32 %v1953, %v1774
        %v1990 = vmul.f32 %v1958, %v1779
        %v1991 = vmul.f32 %v1961, %v1782
        %v1992 = vmul.f32 %v1966, %v1787
        %v1993 = vmul.f32 %v1969, %v1790
        %v1994 = vmul.f32 %v1974, %v1795
        %v1995 = vmul.f32 %v1977, %v1798
        %v1996 = vpack.c.bf16 %v1981, %v1980
        %v1997 = vpack.c.bf16 %v1983, %v1982
        %v1998 = vpack.c.bf16 %v1985, %v1984
        %v1999 = vpack.c.bf16 %v1987, %v1986
        %v2000 = vpack.c.bf16 %v1989, %v1988
        %v2001 = vpack.c.bf16 %v1991, %v1990
        %v2002 = vpack.c.bf16 %v1993, %v1992
        %v2003 = vpack.c.bf16 %v1995, %v1994
        %v2004 = vld [vmem:[#allocation3] sm:$0xff]
        %v2005 = vld [vmem:[#allocation3 + $0x8] sm:$0xff]
        %v2006 = vld [vmem:[#allocation5] sm:$0xf]
        %v2007 = vld [vmem:[#allocation5 + $0x4] sm:$0xf]
        %v2010 = vunpack.c.l.b16 %v2006
        %v2011 = vunpack.c.l.b16 %v2007
        %v2012 = vpack.c.b16 %v2011, %v2010
        %2014 = vmatprep.subr.bf16.mxu0 0
        %2015 = vmatpush1.bf16.msra.mxu0 %v1996
        %2016 = vmatprep.subr.bf16.mxu0 0
        %2017 = vmatpush1.bf16.msra.mxu0 %v1997
        %2018 = vmatprep.subr.bf16.mxu0 0
        %2019 = vmatpush1.bf16.msra.mxu0 %v1998
        %2020 = vmatprep.subr.bf16.mxu0 0
        %2021 = vmatpush1.bf16.msra.mxu0 %v1999
        %2022 = vmatprep.subr.bf16.mxu0 0
        %2023 = vmatpush1.bf16.msra.mxu0 %v2000
        %2024 = vmatprep.subr.bf16.mxu0 0
        %2025 = vmatpush1.bf16.msra.mxu0 %v2001
        %2026 = vmatprep.subr.bf16.mxu0 0
        %2027 = vmatpush1.bf16.msra.mxu0 %v2002
        %2028 = vmatprep.subr.bf16.mxu0 0
        %2029 = vmatpush1.bf16.msra.mxu0 %v2003
        %2030 = vmatprep.subr.bf16.mxu0 0
        %2031 = vmatpush1.bf16.msra.mxu0 0
        %2032 = vmatprep.subr.bf16.mxu0 0
        %2033 = vmatpush1.bf16.msra.mxu0 0
        %2034 = vmatprep.subr.bf16.mxu0 0
        %2035 = vmatpush1.bf16.msra.mxu0 0
        %2036 = vmatprep.subr.bf16.mxu0 0
        %2037 = vmatpush1.bf16.msra.mxu0 0
        %2038 = vmatprep.subr.bf16.mxu0 0
        %2039 = vmatpush1.bf16.msra.mxu0 0
        %2040 = vmatprep.subr.bf16.mxu0 0
        %2041 = vmatpush1.bf16.msra.mxu0 0
        %2042 = vmatprep.subr.bf16.mxu0 0
        %2043 = vmatpush1.bf16.msra.mxu0 0
        %2044 = vmatprep.subr.bf16.mxu0 0
        %2045 = vmatpush1.bf16.msra.mxu0 0
        %2046 = vmatprep.mubr.bf16.mxu0 0
        %2047 = vmatmul.mubr.bf16.gmra.mrb[0].mxu0 %v2012
        %v2048 = vpop.f32.mrb[0].mxu0
        %v2049 = vadd.f32 0.0, %v2048
        %v2050 = vpop.f32.mrb[0].mxu0
        %v2051 = vpop.f32.mrb[0].mxu0
        %v2052 = vadd.f32 0.0, %v2051
        %v2053 = vpop.f32.mrb[0].mxu0
        %2054 = vdwg.mxu0
        %v2055 = vadd.f32 %v2004, %v2049
        %v2056 = vadd.f32 %v2005, %v2052
        %2057 = vst [vmem:[#allocation3] sm:$0xff] %v2055
        %2058 = vst [vmem:[#allocation3 + $0x8] sm:$0xff] %v2056
        // Predicated region
        $region145: #{tpu_custom_call.1} parent=99 // pred_check
          %p2059 = pneg %p993
        $region146: #{tpu_custom_call.1} parent=99 // pred_check_branch
          %2061 = sbr.rel (%p2059) target = $region148
        $region147: #{tpu_custom_call.1} parent=99 // pred_region
          %v2062 = vld [vmem:[#allocation3] sm:$0xff]
          %v2063 = vld [vmem:[#allocation3 + $0x8] sm:$0xff]
          %v2064 = vpack.c.bf16 %v2063, %v2062
          %v2065 = vld [vmem:[%s851] sm:$0xf]
          %v2066 = vld [vmem:[%s851 + $0x4] sm:$0xf]
          %v2067 = vld [vmem:[%s851 + $0x8] sm:$0xf]
          %v2068 = vld [vmem:[%s851 + $0xc] sm:$0xf]
          %v2069 = vld [vmem:[%s851 + $0x10] sm:$0xf]
          %v2070 = vld [vmem:[%s851 + $0x14] sm:$0xf]
          %v2071 = vld [vmem:[%s851 + $0x18] sm:$0xf]
          %v2072 = vld [vmem:[%s851 + $0x1c] sm:$0xf]
          %v2073 = vld [vmem:[%s851 + $0x20] sm:$0xf]
          %v2074 = vld [vmem:[%s851 + $0x24] sm:$0xf]
          %v2075 = vld [vmem:[%s851 + $0x28] sm:$0xf]
          %v2076 = vld [vmem:[%s851 + $0x2c] sm:$0xf]
          %v2077 = vld [vmem:[%s851 + $0x30] sm:$0xf]
          %v2078 = vld [vmem:[%s851 + $0x34] sm:$0xf]
          %v2079 = vld [vmem:[%s851 + $0x38] sm:$0xf]
          %v2080 = vld [vmem:[%s851 + $0x3c] sm:$0xf]
          %v2081 = vld [vmem:[%s981] sm:$0x1]
          %v2083 = vlaneseq
          %v2084 = vshrl.u32 %v2083, 7
          %v2085 = vsub.s32 0, %v2084
          %v2086 = vrot.slane %v2081, %v2085
          %v2104 = vunpack.c.l.b16 %v2065
          %v2105 = vunpack.c.l.b16 %v2066
          %v2106 = vunpack.c.l.b16 %v2067
          %v2107 = vunpack.c.l.b16 %v2068
          %v2108 = vunpack.c.l.b16 %v2069
          %v2109 = vunpack.c.l.b16 %v2070
          %v2110 = vunpack.c.l.b16 %v2071
          %v2111 = vunpack.c.l.b16 %v2072
          %v2112 = vunpack.c.l.b16 %v2073
          %v2113 = vunpack.c.l.b16 %v2074
          %v2114 = vunpack.c.l.b16 %v2075
          %v2115 = vunpack.c.l.b16 %v2076
          %v2116 = vunpack.c.l.b16 %v2077
          %v2117 = vunpack.c.l.b16 %v2078
          %v2118 = vunpack.c.l.b16 %v2079
          %v2119 = vunpack.c.l.b16 %v2080
          %v2120 = vpack.c.b16 %v2105, %v2104
          %v2121 = vpack.c.b16 %v2107, %v2106
          %v2122 = vpack.c.b16 %v2109, %v2108
          %v2123 = vpack.c.b16 %v2111, %v2110
          %v2124 = vpack.c.b16 %v2113, %v2112
          %v2125 = vpack.c.b16 %v2115, %v2114
          %v2126 = vpack.c.b16 %v2117, %v2116
          %v2127 = vpack.c.b16 %v2119, %v2118
          %2136 = vmatprep.subr.bf16.mxu0 0
          %2137 = vmatpush1.bf16.msra.mxu0 %v2120
          %2138 = vmatprep.subr.bf16.mxu0 0
          %2139 = vmatpush1.bf16.msra.mxu0 %v2121
          %2140 = vmatprep.subr.bf16.mxu0 0
          %2141 = vmatpush1.bf16.msra.mxu0 %v2122
          %2142 = vmatprep.subr.bf16.mxu0 0
          %2143 = vmatpush1.bf16.msra.mxu0 %v2123
          %2144 = vmatprep.subr.bf16.mxu0 0
          %2145 = vmatpush1.bf16.msra.mxu0 %v2124
          %2146 = vmatprep.subr.bf16.mxu0 0
          %2147 = vmatpush1.bf16.msra.mxu0 %v2125
          %2148 = vmatprep.subr.bf16.mxu0 0
          %2149 = vmatpush1.bf16.msra.mxu0 %v2126
          %2150 = vmatprep.subr.bf16.mxu0 0
          %2151 = vmatpush1.bf16.msra.mxu0 %v2127
          %2152 = vmatprep.subr.bf16.mxu0 0
          %2153 = vmatpush1.bf16.msra.mxu0 0
          %2154 = vmatprep.subr.bf16.mxu0 0
          %2155 = vmatpush1.bf16.msra.mxu0 0
          %2156 = vmatprep.subr.bf16.mxu0 0
          %2157 = vmatpush1.bf16.msra.mxu0 0
          %2158 = vmatprep.subr.bf16.mxu0 0
          %2159 = vmatpush1.bf16.msra.mxu0 0
          %2160 = vmatprep.subr.bf16.mxu0 0
          %2161 = vmatpush1.bf16.msra.mxu0 0
          %2162 = vmatprep.subr.bf16.mxu0 0
          %2163 = vmatpush1.bf16.msra.mxu0 0
          %2164 = vmatprep.subr.bf16.mxu0 0
          %2165 = vmatpush1.bf16.msra.mxu0 0
          %2166 = vmatprep.subr.bf16.mxu0 0
          %2167 = vmatpush1.bf16.msra.mxu0 0
          %2168 = vmatprep.mubr.bf16.mxu0 0
          %2169 = vmatmul.mubr.bf16.gmra.mrb[0].mxu0 %v2064
          %v2170 = vpop.f32.mrb[0].mxu0
          %v2171 = vadd.f32 %v2086, %v2170
          %v2172 = vpop.f32.mrb[0].mxu0
          %v2173 = vpop.f32.mrb[0].mxu0
          %v2174 = vadd.f32 %v2086, %v2173
          %v2175 = vpop.f32.mrb[0].mxu0
          %2176 = vdwg.mxu0
          %v2177 = vmax.f32 %v2171, 0.0
          %v2178 = vmax.f32 %v2174, 0.0
          %v2179 = vand.u32 2147483647, %v2171
          %v2180 = vand.u32 2147483647, %v2174
          %v2181 = vsub.f32 0.0, %v2179
          %v2182 = vsub.f32 0.0, %v2180
          %v2183 = vmul.f32 %v2181, 1.442695
          %v2184 = vpow.pop %v2183
          %v2185 = vmul.f32 %v2182, 1.442695
          %v2186 = vpow.pop %v2185
          %v2187 = vadd.f32 %v2184, 1.0
          %v2188 = vlog2.pop %v2187
          %v2189 = vmul.f32 %v2188, 0.6931472
          %v2190 = vmul.f32 -0.5, %v2184
          %v2191 = vadd.f32 %v2190, 1.0
          %v2192 = vmul.f32 %v2191, %v2184
          %v2193 = vand.u32 2147483647, %v2184
          %vm2194 = vcmp.lt.f32.partialorder %v2193, 0.0004427343
          %v2195 = vsel %vm2194, %v2192, %v2189
          %v2196 = vadd.f32 %v2186, 1.0
          %v2197 = vlog2.pop %v2196
          %v2198 = vmul.f32 %v2197, 0.6931472
          %v2199 = vmul.f32 -0.5, %v2186
          %v2200 = vadd.f32 %v2199, 1.0
          %v2201 = vmul.f32 %v2200, %v2186
          %v2202 = vand.u32 2147483647, %v2186
          %vm2203 = vcmp.lt.f32.partialorder %v2202, 0.0004427343
          %v2204 = vsel %vm2203, %v2201, %v2198
          %v2205 = vadd.f32 %v2177, %v2195
          %v2206 = vadd.f32 %v2178, %v2204
          %v2207 = vsub.f32 %v2205, 0.6931472
          %v2208 = vsub.f32 %v2206, 0.6931472
          %v2209 = vpack.c.bf16 %v2208, %v2207
          %v2210 = vld [vmem:[%s860] sm:$0xf]
          %v2211 = vld [vmem:[%s860 + $0x4] sm:$0xf]
          %v2212 = vld [vmem:[%s860 + $0x8] sm:$0xf]
          %v2213 = vld [vmem:[%s860 + $0xc] sm:$0xf]
          %v2214 = vld [vmem:[%s860 + $0x10] sm:$0xf]
          %v2215 = vld [vmem:[%s860 + $0x14] sm:$0xf]
          %v2216 = vld [vmem:[%s860 + $0x18] sm:$0xf]
          %v2217 = vld [vmem:[%s860 + $0x1c] sm:$0xf]
          %v2218 = vld [vmem:[%s860 + $0x20] sm:$0xf]
          %v2219 = vld [vmem:[%s860 + $0x24] sm:$0xf]
          %v2220 = vld [vmem:[%s860 + $0x28] sm:$0xf]
          %v2221 = vld [vmem:[%s860 + $0x2c] sm:$0xf]
          %v2222 = vld [vmem:[%s860 + $0x30] sm:$0xf]
          %v2223 = vld [vmem:[%s860 + $0x34] sm:$0xf]
          %v2224 = vld [vmem:[%s860 + $0x38] sm:$0xf]
          %v2225 = vld [vmem:[%s860 + $0x3c] sm:$0xf]
          %v2226 = vld [vmem:[%s984] sm:$0x1]
          %v2228 = vlaneseq
          %v2229 = vshrl.u32 %v2228, 7
          %v2230 = vsub.s32 0, %v2229
          %v2231 = vrot.slane %v2226, %v2230
          %v2249 = vunpack.c.l.b16 %v2210
          %v2250 = vunpack.c.l.b16 %v2211
          %v2251 = vunpack.c.l.b16 %v2212
          %v2252 = vunpack.c.l.b16 %v2213
          %v2253 = vunpack.c.l.b16 %v2214
          %v2254 = vunpack.c.l.b16 %v2215
          %v2255 = vunpack.c.l.b16 %v2216
          %v2256 = vunpack.c.l.b16 %v2217
          %v2257 = vunpack.c.l.b16 %v2218
          %v2258 = vunpack.c.l.b16 %v2219
          %v2259 = vunpack.c.l.b16 %v2220
          %v2260 = vunpack.c.l.b16 %v2221
          %v2261 = vunpack.c.l.b16 %v2222
          %v2262 = vunpack.c.l.b16 %v2223
          %v2263 = vunpack.c.l.b16 %v2224
          %v2264 = vunpack.c.l.b16 %v2225
          %v2265 = vpack.c.b16 %v2250, %v2249
          %v2266 = vpack.c.b16 %v2252, %v2251
          %v2267 = vpack.c.b16 %v2254, %v2253
          %v2268 = vpack.c.b16 %v2256, %v2255
          %v2269 = vpack.c.b16 %v2258, %v2257
          %v2270 = vpack.c.b16 %v2260, %v2259
          %v2271 = vpack.c.b16 %v2262, %v2261
          %v2272 = vpack.c.b16 %v2264, %v2263
          %2281 = vmatprep.subr.bf16.mxu0 0
          %2282 = vmatpush1.bf16.msra.mxu0 %v2265
          %2283 = vmatprep.subr.bf16.mxu0 0
          %2284 = vmatpush1.bf16.msra.mxu0 %v2266
          %2285 = vmatprep.subr.bf16.mxu0 0
          %2286 = vmatpush1.bf16.msra.mxu0 %v2267
          %2287 = vmatprep.subr.bf16.mxu0 0
          %2288 = vmatpush1.bf16.msra.mxu0 %v2268
          %2289 = vmatprep.subr.bf16.mxu0 0
          %2290 = vmatpush1.bf16.msra.mxu0 %v2269
          %2291 = vmatprep.subr.bf16.mxu0 0
          %2292 = vmatpush1.bf16.msra.mxu0 %v2270
          %2293 = vmatprep.subr.bf16.mxu0 0
          %2294 = vmatpush1.bf16.msra.mxu0 %v2271
          %2295 = vmatprep.subr.bf16.mxu0 0
          %2296 = vmatpush1.bf16.msra.mxu0 %v2272
          %2297 = vmatprep.subr.bf16.mxu0 0
          %2298 = vmatpush1.bf16.msra.mxu0 0
          %2299 = vmatprep.subr.bf16.mxu0 0
          %2300 = vmatpush1.bf16.msra.mxu0 0
          %2301 = vmatprep.subr.bf16.mxu0 0
          %2302 = vmatpush1.bf16.msra.mxu0 0
          %2303 = vmatprep.subr.bf16.mxu0 0
          %2304 = vmatpush1.bf16.msra.mxu0 0
          %2305 = vmatprep.subr.bf16.mxu0 0
          %2306 = vmatpush1.bf16.msra.mxu0 0
          %2307 = vmatprep.subr.bf16.mxu0 0
          %2308 = vmatpush1.bf16.msra.mxu0 0
          %2309 = vmatprep.subr.bf16.mxu0 0
          %2310 = vmatpush1.bf16.msra.mxu0 0
          %2311 = vmatprep.subr.bf16.mxu0 0
          %2312 = vmatpush1.bf16.msra.mxu0 0
          %2313 = vmatprep.mubr.bf16.mxu0 0
          %2314 = vmatmul.mubr.bf16.gmra.mrb[0].mxu0 %v2209
          %v2315 = vpop.f32.mrb[0].mxu0
          %v2316 = vadd.f32 %v2231, %v2315
          %v2317 = vpop.f32.mrb[0].mxu0
          %v2318 = vpop.f32.mrb[0].mxu0
          %v2319 = vadd.f32 %v2231, %v2318
          %v2320 = vpop.f32.mrb[0].mxu0
          %2321 = vdwg.mxu0
          %v2322 = vld [vmem:[%s987] sm:$0x1]
          %v2324 = vlaneseq
          %v2325 = vshrl.u32 %v2324, 7
          %v2326 = vsub.s32 0, %v2325
          %v2327 = vrot.slane %v2322, %v2326
          %v2329 = vmul.f32 %v2316, %v2327
          %v2330 = vmul.f32 %v2319, %v2327
          %v2331 = vld [vmem:[%s990] sm:$0x1]
          %v2333 = vlaneseq
          %v2334 = vshrl.u32 %v2333, 7
          %v2335 = vsub.s32 0, %v2334
          %v2336 = vrot.slane %v2331, %v2335
          %v2338 = vadd.f32 %v2329, %v2336
          %v2339 = vadd.f32 %v2330, %v2336
          %v2340 = vmul.f32 %v2338, 0.5
          %v2341 = vmul.f32 %v2339, 0.5
          %v2342 = vmul.f32 %v2338, 0.70710677
          %v2343 = vmul.f32 %v2339, 0.70710677
          %v2344 = verf.f32.pop %v2342
          %v2345 = verf.f32.pop %v2343
          %v2346 = vadd.f32 %v2344, 1.0
          %v2347 = vadd.f32 %v2345, 1.0
          %v2348 = vmul.f32 %v2340, %v2346
          %v2349 = vmul.f32 %v2341, %v2347
          %v2350 = vld [vmem:[#allocation2] sm:$0xff]
          %v2351 = vld [vmem:[#allocation2 + $0x8] sm:$0xff]
          %v2352 = vadd.f32 %v2350, %v2348
          %v2353 = vadd.f32 %v2351, %v2349
          %2354 = vst [vmem:[#allocation2] sm:$0xff] %v2352
          %2355 = vst [vmem:[#allocation2 + $0x8] sm:$0xff] %v2353
        $region148: #{tpu_custom_call.1} parent=99 // pred_fallthru
          _
        %p2356 = scmp.eq.s32.totalorder %s47, 1
        %p2357 = pnand %p2356, %p993
        %p2358 = pneg %p2357
        // Predicated region
        $region149: #{tpu_custom_call.1} parent=99 // pred_check
          _
        $region150: #{tpu_custom_call.1} parent=99 // pred_check_branch
          %2360 = sbr.rel (%p2357) target = $region152
        $region151: #{tpu_custom_call.1} parent=99 // pred_region
          %v2361 = vld [vmem:[#allocation2] sm:$0xff]
          %v2362 = vld [vmem:[#allocation2 + $0x8] sm:$0xff]
          %v2363 = vpack.c.bf16 %v2362, %v2361
          %v2364 = vld [vmem:[%s18] sm:$0xf]
          %v2365 = vld [vmem:[%s18 + $0x4] sm:$0xf]
          %v2366 = vld [vmem:[%s18 + $0x8] sm:$0xf]
          %v2367 = vld [vmem:[%s18 + $0xc] sm:$0xf]
          %v2368 = vld [vmem:[%s18 + $0x10] sm:$0xf]
          %v2369 = vld [vmem:[%s18 + $0x14] sm:$0xf]
          %v2370 = vld [vmem:[%s18 + $0x18] sm:$0xf]
          %v2371 = vld [vmem:[%s18 + $0x1c] sm:$0xf]
          %v2372 = vld [vmem:[%s18 + $0x20] sm:$0xf]
          %v2373 = vld [vmem:[%s18 + $0x24] sm:$0xf]
          %v2374 = vld [vmem:[%s18 + $0x28] sm:$0xf]
          %v2375 = vld [vmem:[%s18 + $0x2c] sm:$0xf]
          %v2376 = vld [vmem:[%s18 + $0x30] sm:$0xf]
          %v2377 = vld [vmem:[%s18 + $0x34] sm:$0xf]
          %v2378 = vld [vmem:[%s18 + $0x38] sm:$0xf]
          %v2379 = vld [vmem:[%s18 + $0x3c] sm:$0xf]
          %v2380 = vld [vmem:[%s19] sm:$0x1]
          %v2382 = vlaneseq
          %v2383 = vshrl.u32 %v2382, 7
          %v2384 = vsub.s32 0, %v2383
          %v2385 = vrot.slane %v2380, %v2384
          %v2403 = vunpack.c.l.b16 %v2364
          %v2404 = vunpack.c.l.b16 %v2365
          %v2405 = vunpack.c.l.b16 %v2366
          %v2406 = vunpack.c.l.b16 %v2367
          %v2407 = vunpack.c.l.b16 %v2368
          %v2408 = vunpack.c.l.b16 %v2369
          %v2409 = vunpack.c.l.b16 %v2370
          %v2410 = vunpack.c.l.b16 %v2371
          %v2411 = vunpack.c.l.b16 %v2372
          %v2412 = vunpack.c.l.b16 %v2373
          %v2413 = vunpack.c.l.b16 %v2374
          %v2414 = vunpack.c.l.b16 %v2375
          %v2415 = vunpack.c.l.b16 %v2376
          %v2416 = vunpack.c.l.b16 %v2377
          %v2417 = vunpack.c.l.b16 %v2378
          %v2418 = vunpack.c.l.b16 %v2379
          %v2419 = vpack.c.b16 %v2404, %v2403
          %v2420 = vpack.c.b16 %v2406, %v2405
          %v2421 = vpack.c.b16 %v2408, %v2407
          %v2422 = vpack.c.b16 %v2410, %v2409
          %v2423 = vpack.c.b16 %v2412, %v2411
          %v2424 = vpack.c.b16 %v2414, %v2413
          %v2425 = vpack.c.b16 %v2416, %v2415
          %v2426 = vpack.c.b16 %v2418, %v2417
          %2435 = vmatprep.subr.bf16.mxu0 0
          %2436 = vmatpush1.bf16.msra.mxu0 %v2419
          %2437 = vmatprep.subr.bf16.mxu0 0
          %2438 = vmatpush1.bf16.msra.mxu0 %v2420
          %2439 = vmatprep.subr.bf16.mxu0 0
          %2440 = vmatpush1.bf16.msra.mxu0 %v2421
          %2441 = vmatprep.subr.bf16.mxu0 0
          %2442 = vmatpush1.bf16.msra.mxu0 %v2422
          %2443 = vmatprep.subr.bf16.mxu0 0
          %2444 = vmatpush1.bf16.msra.mxu0 %v2423
          %2445 = vmatprep.subr.bf16.mxu0 0
          %2446 = vmatpush1.bf16.msra.mxu0 %v2424
          %2447 = vmatprep.subr.bf16.mxu0 0
          %2448 = vmatpush1.bf16.msra.mxu0 %v2425
          %2449 = vmatprep.subr.bf16.mxu0 0
          %2450 = vmatpush1.bf16.msra.mxu0 %v2426
          %2451 = vmatprep.subr.bf16.mxu0 0
          %2452 = vmatpush1.bf16.msra.mxu0 0
          %2453 = vmatprep.subr.bf16.mxu0 0
          %2454 = vmatpush1.bf16.msra.mxu0 0
          %2455 = vmatprep.subr.bf16.mxu0 0
          %2456 = vmatpush1.bf16.msra.mxu0 0
          %2457 = vmatprep.subr.bf16.mxu0 0
          %2458 = vmatpush1.bf16.msra.mxu0 0
          %2459 = vmatprep.subr.bf16.mxu0 0
          %2460 = vmatpush1.bf16.msra.mxu0 0
          %2461 = vmatprep.subr.bf16.mxu0 0
          %2462 = vmatpush1.bf16.msra.mxu0 0
          %2463 = vmatprep.subr.bf16.mxu0 0
          %2464 = vmatpush1.bf16.msra.mxu0 0
          %2465 = vmatprep.subr.bf16.mxu0 0
          %2466 = vmatpush1.bf16.msra.mxu0 0
          %2467 = vmatprep.mubr.bf16.mxu0 0
          %2468 = vmatmul.mubr.bf16.gmra.mrb[0].mxu0 %v2363
          %v2469 = vpop.f32.mrb[0].mxu0
          %v2470 = vadd.f32 %v2385, %v2469
          %v2471 = vpop.f32.mrb[0].mxu0
          %v2472 = vpop.f32.mrb[0].mxu0
          %v2473 = vadd.f32 %v2385, %v2472
          %v2474 = vpop.f32.mrb[0].mxu0
          %2475 = vdwg.mxu0
          %v2476 = vld [vmem:[#allocation8] sm:$0xf]
          %v2477 = vpack.c.bf16 %v2473, %v2470
          %v2479 = vsel %vm1858, %v2476, 0
          %2481 = vmatprep.subr.bf16.mxu0 0
          %2482 = vmatpush1.bf16.msra.mxu0 %v2477
          %2483 = vmatprep.subr.bf16.mxu0 0
          %2484 = vmatpush1.bf16.msra.mxu0 0
          %2485 = vmatprep.subr.bf16.mxu0 0
          %2486 = vmatpush1.bf16.msra.mxu0 0
          %2487 = vmatprep.subr.bf16.mxu0 0
          %2488 = vmatpush1.bf16.msra.mxu0 0
          %2489 = vmatprep.subr.bf16.mxu0 0
          %2490 = vmatpush1.bf16.msra.mxu0 0
          %2491 = vmatprep.subr.bf16.mxu0 0
          %2492 = vmatpush1.bf16.msra.mxu0 0
          %2493 = vmatprep.subr.bf16.mxu0 0
          %2494 = vmatpush1.bf16.msra.mxu0 0
          %2495 = vmatprep.subr.bf16.mxu0 0
          %2496 = vmatpush1.bf16.msra.mxu0 0
          %2497 = vmatprep.subr.bf16.mxu0 0
          %2498 = vmatpush1.bf16.msra.mxu0 0
          %2499 = vmatprep.subr.bf16.mxu0 0
          %2500 = vmatpush1.bf16.msra.mxu0 0
          %2501 = vmatprep.subr.bf16.mxu0 0
          %2502 = vmatpush1.bf16.msra.mxu0 0
          %2503 = vmatprep.subr.bf16.mxu0 0
          %2504 = vmatpush1.bf16.msra.mxu0 0
          %2505 = vmatprep.subr.bf16.mxu0 0
          %2506 = vmatpush1.bf16.msra.mxu0 0
          %2507 = vmatprep.subr.bf16.mxu0 0
          %2508 = vmatpush1.bf16.msra.mxu0 0
          %2509 = vmatprep.subr.bf16.mxu0 0
          %2510 = vmatpush1.bf16.msra.mxu0 0
          %2511 = vmatprep.subr.bf16.mxu0 0
          %2512 = vmatpush1.bf16.msra.mxu0 0
          %2513 = vmatprep.mubr.bf16.mxu0 0
          %2514 = vmatmul.mubr.bf16.gmra.mrb[0].mxu0 %v2479
          %v2515 = vpop.f32.mrb[0].mxu0
          %v2516 = vadd.f32 0.0, %v2515
          %v2517 = vpop.f32.mrb[0].mxu0
          %v2518 = vpop.f32.mrb[0].mxu0
          %v2519 = vpop.f32.mrb[0].mxu0
          %2520 = vdwg.mxu0
          %2521 = vst [vmem:[#allocation20] sm:$0xff] %v2516
        $region152: #{tpu_custom_call.1} parent=99 // pred_fallthru
          _
        // Predicated region
        $region153: #{tpu_custom_call.1} parent=99 // pred_check
          %p2522 = pneg %p558
        $region154: #{tpu_custom_call.1} parent=99 // pred_check_branch
          %2524 = sbr.rel (%p2522) target = $region156
        $region155: #{tpu_custom_call.1} parent=99 // pred_region
          %s2526 = ssub.s32 128, 128
          %2527 = vsyncadd [#allocation7], %s2526
          %s2529 = sshll.u32 [#allocation20], 4
          %s2530 = int_to_ptr.vmem [resolvable:$true] %s2529
          %2532 = dma.vmem_to_hbm [thread:$0]  %s2530, 128, %s20, [#allocation7]
        $region156: #{tpu_custom_call.1} parent=99 // pred_fallthru
          _
        // Predicated region
        $region157: #{tpu_custom_call.1} parent=99 // pred_check
          %p2533 = pneg %p558
        $region158: #{tpu_custom_call.1} parent=99 // pred_check_branch
          %2535 = sbr.rel (%p2533) target = $region160
        $region159: #{tpu_custom_call.1} parent=99 // pred_region
          %2536 = dma.done [#allocation7], 128
        $region160: #{tpu_custom_call.1} parent=99 // pred_fallthru
          _
      $region100: #{tpu_custom_call.1} parent=5 // pred_fallthru
        _
      %p2537 = scmp.le.s32.totalorder 2, %s38
      // Predicated region
      $region161: #{tpu_custom_call.1} parent=5 // pred_check
        %p2538 = pneg %p2537
      $region162: #{tpu_custom_call.1} parent=5 // pred_check_branch
        %2540 = sbr.rel (%p2538) target = $region164
      $region163: #{tpu_custom_call.1} parent=5 // pred_region
        %s2541 = ssub.s32 %s38, 2
      $region164: #{tpu_custom_call.1} parent=5 // pred_fallthru
        _
    $region6: #{tpu_custom_call.1} parent=1 // loop_footer
      %s42 = sadd.s32 1, %s38
    $region7: #{tpu_custom_call.1} parent=1 // loop_footer_branch
      %37 = sbr.rel target = $region3
    $region8: #{tpu_custom_call.1} parent=1 // loop_exit
      _
    %2542 = vsyncpa [#allocation6], 1
    %s2543 = scalar_lea.sflag [#allocation6], 1
    %2544 = vsyncpa %s2543, 1
    %2545 = vsyncpa [#allocation9], 1
    %2546 = vsyncpa [#allocation12], 1
    %s2547 = scalar_lea.sflag [#allocation12], 1
    %2548 = vsyncpa %s2547, 1
    %2549 = vsyncpa [#allocation15], 1
    %s2550 = scalar_lea.sflag [#allocation15], 1
    %2551 = vsyncpa %s2550, 1
    %2552 = vsyncpa [#allocation18], 1
    %s2553 = scalar_lea.sflag [#allocation18], 1
    %2554 = vsyncpa %s2553, 1
    %2555 = vsyncpa [#allocation7], 1
    %s2556 = scalar_lea.sflag [#allocation7], 1
    %2557 = vsyncpa %s2556, 1

</llo_original>
